<compile_context>
chip_gen: v7x
topology: tpu7x:2x2x1
jax: 0.10.0
libtpu: 0.0.40
codegen_flags: <defaults>
</compile_context>

<pallas_src>
import jax
import jax.numpy as jnp
import numpy as np
from jax.experimental import pallas as pl
from jax.experimental.pallas import tpu as pltpu

HIDDEN = 100
INPUT_SIZE = 1
NUM_CLASSES = 1
NUM_LAYERS = 10
HP = 128            # hidden padded to lane width
G4 = 4 * HP         # gate dim with per-gate padding
CP = 128            # FC output padded to lane width


def make_lstm_kernel(T, B):
    """One grid step == one LSTM layer (grid=(NUM_LAYERS,), sequential)."""

    def kernel(xg0_ref, wih_ref, whh_ref, b_ref, fcw_ref, fcb_ref,
               out_ref, seq_ref, xg_ref):
        # xg0_ref : (T*B, G4)  f32   layer-0 input->gates (precomputed in wrapper)
        # wih_ref : (HP, G4)   bf16  this layer's input->gates weight
        # whh_ref : (HP, G4)   bf16  this layer's hidden->gates weight
        # b_ref   : (1, G4)    f32   this layer's combined bias (b_ih + b_hh)
        # fcw_ref : (HP, CP)   f32   FC weight (lane-padded);  fcb_ref: (1, CP)
        # out_ref : (B, CP)    f32   written only on the last layer
        # seq_ref : (T*B, HP)  f32   scratch: hidden sequence (persists across layers)
        # xg_ref  : (T*B, G4)  f32   scratch: this layer's hoisted input->gates
        l = pl.program_id(0)

        # ---- input->gates for this layer (hoisted out of the time loop).
        @pl.when(l == 0)
        def _():
            xg_ref[...] = xg0_ref[...]

        @pl.when(l > 0)
        def _():
            xg_ref[...] = (
                jnp.dot(seq_ref[...].astype(jnp.bfloat16), wih_ref[...],
                        preferred_element_type=jnp.float32)
                + b_ref[...])

        # Load whh once; reused across the fully unrolled time loop so the
        # compiler can keep the MXU RHS resident across the 8 steps.
        whh = whh_ref[...]                                   # (HP, G4) bf16

        # ---- serial recurrence over time; h/c carried in registers.
        h = jnp.zeros((B, HP), jnp.float32)
        c = jnp.zeros((B, HP), jnp.float32)
        for t in range(T):                                   # static unroll
            gates = xg_ref[t * B:(t + 1) * B, :] + jnp.dot(
                h.astype(jnp.bfloat16), whh,
                preferred_element_type=jnp.float32)
            i = jax.nn.sigmoid(gates[:, 0 * HP:1 * HP])
            f = jax.nn.sigmoid(gates[:, 1 * HP:2 * HP])
            g = jnp.tanh(gates[:, 2 * HP:3 * HP])
            o = jax.nn.sigmoid(gates[:, 3 * HP:4 * HP])
            c = f * c + i * g
            h = o * jnp.tanh(c)
            seq_ref[t * B:(t + 1) * B, :] = h                # static row slice

        # ---- FC head on the last layer's final hidden state.
        @pl.when(l == pl.num_programs(0) - 1)
        def _():
            out_ref[...] = (jnp.dot(h, fcw_ref[...],
                                    preferred_element_type=jnp.float32)
                            + fcb_ref[...])

    return kernel


# ----------------------- parameter init / packing (glue) --------------------

def init_raw_params(key):
    """PyTorch-layout parameters, uniform(-1/sqrt(H), 1/sqrt(H)) like nn.LSTM."""
    bound = 1.0 / np.sqrt(HIDDEN)
    layers = []
    for l in range(NUM_LAYERS):
        din = INPUT_SIZE if l == 0 else HIDDEN
        key, k1, k2, k3, k4 = jax.random.split(key, 5)
        w_ih = jax.random.uniform(k1, (4 * HIDDEN, din), jnp.float32, -bound, bound)
        w_hh = jax.random.uniform(k2, (4 * HIDDEN, HIDDEN), jnp.float32, -bound, bound)
        b_ih = jax.random.uniform(k3, (4 * HIDDEN,), jnp.float32, -bound, bound)
        b_hh = jax.random.uniform(k4, (4 * HIDDEN,), jnp.float32, -bound, bound)
        layers.append((w_ih, w_hh, b_ih, b_hh))
    key, k5, k6 = jax.random.split(key, 3)
    fc_bound = 1.0 / np.sqrt(HIDDEN)
    fc_w = jax.random.uniform(k5, (NUM_CLASSES, HIDDEN), jnp.float32, -fc_bound, fc_bound)
    fc_b = jax.random.uniform(k6, (NUM_CLASSES,), jnp.float32, -fc_bound, fc_bound)
    return {"layers": layers, "fc_w": fc_w, "fc_b": fc_b}


def _pack_gate_weight(w):
    """(4H, Din) torch layout -> (HP, 4*HP) right-multiply, per-gate padded."""
    din = w.shape[1]
    w = w.reshape(4, HIDDEN, din)
    w = jnp.pad(w, ((0, 0), (0, HP - HIDDEN), (0, HP - din)))
    return jnp.transpose(w, (2, 0, 1)).reshape(HP, 4 * HP)


def _pack_bias(b_ih, b_hh):
    b = (b_ih + b_hh).reshape(4, HIDDEN)
    b = jnp.pad(b, ((0, 0), (0, HP - HIDDEN)))
    return b.reshape(1, 4 * HP)


def pack_params(raw):
    # Zero-padding is applied in f32 first, then cast, so padded lanes stay
    # exactly zero in bf16.
    wih_p = jnp.stack([_pack_gate_weight(w_ih)
                       for (w_ih, _, _, _) in raw["layers"]]).astype(jnp.bfloat16)
    whh_p = jnp.stack([_pack_gate_weight(w_hh)
                       for (_, w_hh, _, _) in raw["layers"]]).astype(jnp.bfloat16)
    b_p = jnp.stack([_pack_bias(b_ih, b_hh)
                     for (_, _, b_ih, b_hh) in raw["layers"]])          # f32 (L,1,G4)
    fcw_p = jnp.pad(raw["fc_w"].T,
                    ((0, HP - HIDDEN), (0, CP - NUM_CLASSES)))          # (HP, CP)
    fcb_p = jnp.pad(raw["fc_b"].reshape(1, NUM_CLASSES),
                    ((0, 0), (0, CP - NUM_CLASSES)))                    # (1, CP)
    return wih_p, whh_p, b_p, fcw_p, fcb_p


# ------------------------------- wrapper ------------------------------------

def rnn_forward(x, packed):
    wih_p, whh_p, b_p, fcw_p, fcb_p = packed
    B, T, _ = x.shape
    TB = T * B

    # Time-major, row t*B + b  == (timestep t, batch b).
    x_tm = jnp.transpose(x, (1, 0, 2)).reshape(TB, 1).astype(jnp.float32)

    # Layer-0 input projection as an outer product (din == 1): x * wih0_row + b0.
    # Done here (cheap VPU elementwise in XLA) so the kernel never multiplies
    # the 127 zero-padded input lanes and never needs the raw input sequence.
    xg0 = x_tm * wih_p[0, 0].astype(jnp.float32)[None, :] + b_p[0, 0][None, :]

    out = pl.pallas_call(
        make_lstm_kernel(T, B),
        out_shape=jax.ShapeDtypeStruct((B, CP), jnp.float32),
        grid_spec=pltpu.PrefetchScalarGridSpec(
            num_scalar_prefetch=0,
            grid=(NUM_LAYERS,),
            in_specs=[
                pl.BlockSpec((TB, G4), lambda l: (0, 0)),          # xg0 (resident)
                pl.BlockSpec((None, HP, G4), lambda l: (l, 0, 0)),  # wih[l]
                pl.BlockSpec((None, HP, G4), lambda l: (l, 0, 0)),  # whh[l]
                pl.BlockSpec((None, 1, G4), lambda l: (l, 0, 0)),   # b[l]
                pl.BlockSpec((HP, CP), lambda l: (0, 0)),           # fc weight
                pl.BlockSpec((1, CP), lambda l: (0, 0)),            # fc bias
            ],
            out_specs=pl.BlockSpec((B, CP), lambda l: (0, 0)),
            scratch_shapes=[
                pltpu.VMEM((TB, HP), jnp.float32),   # hidden sequence (persists across layers)
                pltpu.VMEM((TB, G4), jnp.float32),   # hoisted input->gates of current layer
            ]),
        compiler_params=pltpu.CompilerParams(
            # Layers are sequentially dependent through the seq scratch.
            dimension_semantics=("arbitrary",)),
    )(xg0, wih_p, whh_p, b_p, fcw_p, fcb_p)

    return out[:, :NUM_CLASSES]


# ------------------------------ reference -----------------------------------

def rnn_reference(x, raw):
    B, T, _ = x.shape
    seq = x.astype(jnp.float32)
    for l in range(NUM_LAYERS):
        w_ih, w_hh, b_ih, b_hh = raw["layers"][l]
        h = jnp.zeros((B, HIDDEN), jnp.float32)
        c = jnp.zeros((B, HIDDEN), jnp.float32)
        outs = []
        for t in range(T):
            gates = seq[:, t, :] @ w_ih.T + b_ih + h @ w_hh.T + b_hh
            i, f, g, o = jnp.split(gates, 4, axis=-1)
            i, f, o = jax.nn.sigmoid(i), jax.nn.sigmoid(f), jax.nn.sigmoid(o)
            g = jnp.tanh(g)
            c = f * c + i * g
            h = o * jnp.tanh(c)
            outs.append(h)
        seq = jnp.stack(outs, axis=1)
    return seq[:, -1, :] @ raw["fc_w"].T + raw["fc_b"]


if __name__ == "__main__":
    key = jax.random.PRNGKey(0)
    k_x, k_p = jax.random.split(key)

    B, T = 2, 8
    x = jax.random.normal(k_x, (B, T, INPUT_SIZE), jnp.float32)

    raw = init_raw_params(k_p)
    packed = pack_params(raw)

    out = jax.block_until_ready(rnn_forward(x, packed))
    ref = jax.block_until_ready(rnn_reference(x, raw))

    assert out.shape == (B, NUM_CLASSES), out.shape
    # Tolerance accounts for bf16 MXU operands (accumulation stays f32).
    np.testing.assert_allclose(np.asarray(out), np.asarray(ref), rtol=2e-3, atol=2e-3)
    print("KERNEL_OK")
</pallas_src>

<mosaic_0001>
module attributes {stable_mosaic.version = 11 : i64} {
  func.func @kernel(%arg0: i32, %arg1: memref<16x512xf32, #tpu.memory_space<vmem>>, %arg2: memref<1x128x512xbf16, #tpu.memory_space<vmem>>, %arg3: memref<1x128x512xbf16, #tpu.memory_space<vmem>>, %arg4: memref<1x1x512xf32, #tpu.memory_space<vmem>>, %arg5: memref<128x128xf32, #tpu.memory_space<vmem>>, %arg6: memref<1x128xf32, #tpu.memory_space<vmem>>, %arg7: memref<2x128xf32, #tpu.memory_space<vmem>>, %arg8: memref<16x128xf32, #tpu.memory_space<vmem>>, %arg9: memref<16x512xf32, #tpu.memory_space<vmem>>) attributes {dimension_semantics = [#tpu.dimension_semantics<arbitrary>], iteration_bounds = array<i64: 10>, scalar_prefetch = 0 : i64, scratch_operands = 2 : i64, tpu.core_type = #tpu.core_type<tc>, window_params = [{pipeline_mode = #tpu.pipeline_mode<synchronous>, transform_indices = @transform_0, window_bounds = array<i64: 16, 512>}, {transform_indices = @transform_1, window_bounds = array<i64: 1, 128, 512>}, {transform_indices = @transform_2, window_bounds = array<i64: 1, 128, 512>}, {transform_indices = @transform_3, window_bounds = array<i64: 1, 1, 512>}, {pipeline_mode = #tpu.pipeline_mode<synchronous>, transform_indices = @transform_4, window_bounds = array<i64: 128, 128>}, {pipeline_mode = #tpu.pipeline_mode<synchronous>, transform_indices = @transform_5, window_bounds = array<i64: 1, 128>}, {pipeline_mode = #tpu.pipeline_mode<synchronous>, transform_indices = @transform_6, window_bounds = array<i64: 2, 128>}]} {
    %c0_i32 = arith.constant 0 : i32
    %0 = arith.cmpi eq, %arg0, %c0_i32 : i32
    %1 = arith.extui %0 : i1 to i32
    %c0_i32_0 = arith.constant 0 : i32
    %2 = arith.cmpi ne, %1, %c0_i32_0 : i32
    scf.if %2 {
      %c0_64 = arith.constant 0 : index
      %c0_65 = arith.constant 0 : index
      %253 = vector.load %arg1[%c0_64, %c0_65] : memref<16x512xf32, #tpu.memory_space<vmem>>, vector<16x512xf32>
      %c0_66 = arith.constant 0 : index
      %c0_67 = arith.constant 0 : index
      %254 = vector.load %arg9[%c0_66, %c0_67] : memref<16x512xf32, #tpu.memory_space<vmem>>, vector<16x512xf32>
      tpu.vector_store %arg9[%c0_66, %c0_67], %253 {strides = array<i32>} : memref<16x512xf32, #tpu.memory_space<vmem>>, vector<16x512xf32>,
    } else {
    }
    %c0_i32_1 = arith.constant 0 : i32
    %3 = arith.cmpi sgt, %arg0, %c0_i32_1 : i32
    %4 = arith.extui %3 : i1 to i32
    %c0_i32_2 = arith.constant 0 : i32
    %5 = arith.cmpi ne, %4, %c0_i32_2 : i32
    scf.if %5 {
      %c0_64 = arith.constant 0 : index
      %c0_65 = arith.constant 0 : index
      %253 = vector.load %arg8[%c0_64, %c0_65] : memref<16x128xf32, #tpu.memory_space<vmem>>, vector<16x128xf32>
      %254 = arith.truncf %253 : vector<16x128xf32> to vector<16x128xbf16>
      %c0_66 = arith.constant 0 : index
      %c0_67 = arith.constant 0 : index
      %c0_68 = arith.constant 0 : index
      %255 = vector.load %arg2[%c0_66, %c0_67, %c0_68] : memref<1x128x512xbf16, #tpu.memory_space<vmem>>, vector<1x128x512xbf16>
      %256 = vector.shape_cast %255 : vector<1x128x512xbf16> to vector<128x512xbf16>
      %cst_69 = arith.constant dense<0.000000e+00> : vector<16x512xf32>
      %257 = tpu.matmul %254, %256, %cst_69 {dimension_numbers = #tpu.dot_dimension_numbers<[1], [0], [0], [1], [0, 0, 1, 1], [], []>} : vector<16x128xbf16>, vector<128x512xbf16>, vector<16x512xf32> -> vector<16x512xf32>
      %c0_70 = arith.constant 0 : index
      %c0_71 = arith.constant 0 : index
      %c0_72 = arith.constant 0 : index
      %258 = vector.load %arg4[%c0_70, %c0_71, %c0_72] : memref<1x1x512xf32, #tpu.memory_space<vmem>>, vector<1x1x512xf32>
      %259 = vector.shape_cast %258 : vector<1x1x512xf32> to vector<1x512xf32>
      %260 = vector.broadcast %259 : vector<1x512xf32> to vector<16x512xf32>
      %261 = arith.addf %257, %260 : vector<16x512xf32>
      %c0_73 = arith.constant 0 : index
      %c0_74 = arith.constant 0 : index
      %262 = vector.load %arg9[%c0_73, %c0_74] : memref<16x512xf32, #tpu.memory_space<vmem>>, vector<16x512xf32>
      tpu.vector_store %arg9[%c0_73, %c0_74], %261 {strides = array<i32>} : memref<16x512xf32, #tpu.memory_space<vmem>>, vector<16x512xf32>,
    } else {
    }
    %c0 = arith.constant 0 : index
    %c0_3 = arith.constant 0 : index
    %c0_4 = arith.constant 0 : index
    %6 = vector.load %arg3[%c0, %c0_3, %c0_4] : memref<1x128x512xbf16, #tpu.memory_space<vmem>>, vector<1x128x512xbf16>
    %7 = vector.shape_cast %6 : vector<1x128x512xbf16> to vector<128x512xbf16>
    %cst = arith.constant 0.000000e+00 : f32
    %8 = vector.broadcast %cst : f32 to vector<2x128xf32>
    %cst_5 = arith.constant 0.000000e+00 : f32
    %9 = vector.broadcast %cst_5 : f32 to vector<2x128xf32>
    %c0_6 = arith.constant 0 : index
    %c0_7 = arith.constant 0 : index
    %10 = vector.load %arg9[%c0_6, %c0_7] : memref<16x512xf32, #tpu.memory_space<vmem>>, vector<2x512xf32>
    %11 = arith.truncf %8 : vector<2x128xf32> to vector<2x128xbf16>
    %cst_8 = arith.constant dense<0.000000e+00> : vector<2x512xf32>
    %12 = tpu.matmul %11, %7, %cst_8 {dimension_numbers = #tpu.dot_dimension_numbers<[1], [0], [0], [1], [0, 0, 1, 1], [], []>} : vector<2x128xbf16>, vector<128x512xbf16>, vector<2x512xf32> -> vector<2x512xf32>
    %13 = arith.addf %10, %12 : vector<2x512xf32>
    %14 = vector.extract_strided_slice %13 {offsets = [0, 0], sizes = [2, 128], strides = [1, 1]} : vector<2x512xf32> to vector<2x128xf32>
    %15 = arith.negf %14 : vector<2x128xf32>
    %16 = math.exp %15 : vector<2x128xf32>
    %cst_9 = arith.constant 1.000000e+00 : f32
    %17 = vector.broadcast %cst_9 : f32 to vector<2x128xf32>
    %18 = arith.addf %17, %16 : vector<2x128xf32>
    %19 = arith.divf %17, %18 : vector<2x128xf32>
    %20 = vector.extract_strided_slice %13 {offsets = [0, 128], sizes = [2, 128], strides = [1, 1]} : vector<2x512xf32> to vector<2x128xf32>
    %21 = arith.negf %20 : vector<2x128xf32>
    %22 = math.exp %21 : vector<2x128xf32>
    %cst_10 = arith.constant 1.000000e+00 : f32
    %23 = vector.broadcast %cst_10 : f32 to vector<2x128xf32>
    %24 = arith.addf %23, %22 : vector<2x128xf32>
    %25 = arith.divf %23, %24 : vector<2x128xf32>
    %26 = vector.extract_strided_slice %13 {offsets = [0, 256], sizes = [2, 128], strides = [1, 1]} : vector<2x512xf32> to vector<2x128xf32>
    %27 = math.tanh %26 : vector<2x128xf32>
    %28 = vector.extract_strided_slice %13 {offsets = [0, 384], sizes = [2, 128], strides = [1, 1]} : vector<2x512xf32> to vector<2x128xf32>
    %29 = arith.negf %28 : vector<2x128xf32>
    %30 = math.exp %29 : vector<2x128xf32>
    %cst_11 = arith.constant 1.000000e+00 : f32
    %31 = vector.broadcast %cst_11 : f32 to vector<2x128xf32>
    %32 = arith.addf %31, %30 : vector<2x128xf32>
    %33 = arith.divf %31, %32 : vector<2x128xf32>
    %34 = arith.mulf %25, %9 : vector<2x128xf32>
    %35 = arith.mulf %19, %27 : vector<2x128xf32>
    %36 = arith.addf %34, %35 : vector<2x128xf32>
    %37 = math.tanh %36 : vector<2x128xf32>
    %38 = arith.mulf %33, %37 : vector<2x128xf32>
    %c0_12 = arith.constant 0 : index
    %c0_13 = arith.constant 0 : index
    %39 = vector.load %arg8[%c0_12, %c0_13] : memref<16x128xf32, #tpu.memory_space<vmem>>, vector<2x128xf32>
    tpu.vector_store %arg8[%c0_12, %c0_13], %38 {strides = array<i32>} : memref<16x128xf32, #tpu.memory_space<vmem>>, vector<2x128xf32>,
    %c2 = arith.constant 2 : index
    %c0_14 = arith.constant 0 : index
    %40 = vector.load %arg9[%c2, %c0_14] : memref<16x512xf32, #tpu.memory_space<vmem>>, vector<2x512xf32>
    %41 = arith.truncf %38 : vector<2x128xf32> to vector<2x128xbf16>
    %cst_15 = arith.constant dense<0.000000e+00> : vector<2x512xf32>
    %42 = tpu.matmul %41, %7, %cst_15 {dimension_numbers = #tpu.dot_dimension_numbers<[1], [0], [0], [1], [0, 0, 1, 1], [], []>} : vector<2x128xbf16>, vector<128x512xbf16>, vector<2x512xf32> -> vector<2x512xf32>
    %43 = arith.addf %40, %42 : vector<2x512xf32>
    %44 = vector.extract_strided_slice %43 {offsets = [0, 0], sizes = [2, 128], strides = [1, 1]} : vector<2x512xf32> to vector<2x128xf32>
    %45 = arith.negf %44 : vector<2x128xf32>
    %46 = math.exp %45 : vector<2x128xf32>
    %cst_16 = arith.constant 1.000000e+00 : f32
    %47 = vector.broadcast %cst_16 : f32 to vector<2x128xf32>
    %48 = arith.addf %47, %46 : vector<2x128xf32>
    %49 = arith.divf %47, %48 : vector<2x128xf32>
    %50 = vector.extract_strided_slice %43 {offsets = [0, 128], sizes = [2, 128], strides = [1, 1]} : vector<2x512xf32> to vector<2x128xf32>
    %51 = arith.negf %50 : vector<2x128xf32>
    %52 = math.exp %51 : vector<2x128xf32>
    %cst_17 = arith.constant 1.000000e+00 : f32
    %53 = vector.broadcast %cst_17 : f32 to vector<2x128xf32>
    %54 = arith.addf %53, %52 : vector<2x128xf32>
    %55 = arith.divf %53, %54 : vector<2x128xf32>
    %56 = vector.extract_strided_slice %43 {offsets = [0, 256], sizes = [2, 128], strides = [1, 1]} : vector<2x512xf32> to vector<2x128xf32>
    %57 = math.tanh %56 : vector<2x128xf32>
    %58 = vector.extract_strided_slice %43 {offsets = [0, 384], sizes = [2, 128], strides = [1, 1]} : vector<2x512xf32> to vector<2x128xf32>
    %59 = arith.negf %58 : vector<2x128xf32>
    %60 = math.exp %59 : vector<2x128xf32>
    %cst_18 = arith.constant 1.000000e+00 : f32
    %61 = vector.broadcast %cst_18 : f32 to vector<2x128xf32>
    %62 = arith.addf %61, %60 : vector<2x128xf32>
    %63 = arith.divf %61, %62 : vector<2x128xf32>
    %64 = arith.mulf %55, %36 : vector<2x128xf32>
    %65 = arith.mulf %49, %57 : vector<2x128xf32>
    %66 = arith.addf %64, %65 : vector<2x128xf32>
    %67 = math.tanh %66 : vector<2x128xf32>
    %68 = arith.mulf %63, %67 : vector<2x128xf32>
    %c2_19 = arith.constant 2 : index
    %c0_20 = arith.constant 0 : index
    %69 = vector.load %arg8[%c2_19, %c0_20] : memref<16x128xf32, #tpu.memory_space<vmem>>, vector<2x128xf32>
    tpu.vector_store %arg8[%c2_19, %c0_20], %68 {strides = array<i32>} : memref<16x128xf32, #tpu.memory_space<vmem>>, vector<2x128xf32>,
    %c4 = arith.constant 4 : index
    %c0_21 = arith.constant 0 : index
    %70 = vector.load %arg9[%c4, %c0_21] : memref<16x512xf32, #tpu.memory_space<vmem>>, vector<2x512xf32>
    %71 = arith.truncf %68 : vector<2x128xf32> to vector<2x128xbf16>
    %cst_22 = arith.constant dense<0.000000e+00> : vector<2x512xf32>
    %72 = tpu.matmul %71, %7, %cst_22 {dimension_numbers = #tpu.dot_dimension_numbers<[1], [0], [0], [1], [0, 0, 1, 1], [], []>} : vector<2x128xbf16>, vector<128x512xbf16>, vector<2x512xf32> -> vector<2x512xf32>
    %73 = arith.addf %70, %72 : vector<2x512xf32>
    %74 = vector.extract_strided_slice %73 {offsets = [0, 0], sizes = [2, 128], strides = [1, 1]} : vector<2x512xf32> to vector<2x128xf32>
    %75 = arith.negf %74 : vector<2x128xf32>
    %76 = math.exp %75 : vector<2x128xf32>
    %cst_23 = arith.constant 1.000000e+00 : f32
    %77 = vector.broadcast %cst_23 : f32 to vector<2x128xf32>
    %78 = arith.addf %77, %76 : vector<2x128xf32>
    %79 = arith.divf %77, %78 : vector<2x128xf32>
    %80 = vector.extract_strided_slice %73 {offsets = [0, 128], sizes = [2, 128], strides = [1, 1]} : vector<2x512xf32> to vector<2x128xf32>
    %81 = arith.negf %80 : vector<2x128xf32>
    %82 = math.exp %81 : vector<2x128xf32>
    %cst_24 = arith.constant 1.000000e+00 : f32
    %83 = vector.broadcast %cst_24 : f32 to vector<2x128xf32>
    %84 = arith.addf %83, %82 : vector<2x128xf32>
    %85 = arith.divf %83, %84 : vector<2x128xf32>
    %86 = vector.extract_strided_slice %73 {offsets = [0, 256], sizes = [2, 128], strides = [1, 1]} : vector<2x512xf32> to vector<2x128xf32>
    %87 = math.tanh %86 : vector<2x128xf32>
    %88 = vector.extract_strided_slice %73 {offsets = [0, 384], sizes = [2, 128], strides = [1, 1]} : vector<2x512xf32> to vector<2x128xf32>
    %89 = arith.negf %88 : vector<2x128xf32>
    %90 = math.exp %89 : vector<2x128xf32>
    %cst_25 = arith.constant 1.000000e+00 : f32
    %91 = vector.broadcast %cst_25 : f32 to vector<2x128xf32>
    %92 = arith.addf %91, %90 : vector<2x128xf32>
    %93 = arith.divf %91, %92 : vector<2x128xf32>
    %94 = arith.mulf %85, %66 : vector<2x128xf32>
    %95 = arith.mulf %79, %87 : vector<2x128xf32>
    %96 = arith.addf %94, %95 : vector<2x128xf32>
    %97 = math.tanh %96 : vector<2x128xf32>
    %98 = arith.mulf %93, %97 : vector<2x128xf32>
    %c4_26 = arith.constant 4 : index
    %c0_27 = arith.constant 0 : index
    %99 = vector.load %arg8[%c4_26, %c0_27] : memref<16x128xf32, #tpu.memory_space<vmem>>, vector<2x128xf32>
    tpu.vector_store %arg8[%c4_26, %c0_27], %98 {strides = array<i32>} : memref<16x128xf32, #tpu.memory_space<vmem>>, vector<2x128xf32>,
    %c6 = arith.constant 6 : index
    %c0_28 = arith.constant 0 : index
    %100 = vector.load %arg9[%c6, %c0_28] : memref<16x512xf32, #tpu.memory_space<vmem>>, vector<2x512xf32>
    %101 = arith.truncf %98 : vector<2x128xf32> to vector<2x128xbf16>
    %cst_29 = arith.constant dense<0.000000e+00> : vector<2x512xf32>
    %102 = tpu.matmul %101, %7, %cst_29 {dimension_numbers = #tpu.dot_dimension_numbers<[1], [0], [0], [1], [0, 0, 1, 1], [], []>} : vector<2x128xbf16>, vector<128x512xbf16>, vector<2x512xf32> -> vector<2x512xf32>
    %103 = arith.addf %100, %102 : vector<2x512xf32>
    %104 = vector.extract_strided_slice %103 {offsets = [0, 0], sizes = [2, 128], strides = [1, 1]} : vector<2x512xf32> to vector<2x128xf32>
    %105 = arith.negf %104 : vector<2x128xf32>
    %106 = math.exp %105 : vector<2x128xf32>
    %cst_30 = arith.constant 1.000000e+00 : f32
    %107 = vector.broadcast %cst_30 : f32 to vector<2x128xf32>
    %108 = arith.addf %107, %106 : vector<2x128xf32>
    %109 = arith.divf %107, %108 : vector<2x128xf32>
    %110 = vector.extract_strided_slice %103 {offsets = [0, 128], sizes = [2, 128], strides = [1, 1]} : vector<2x512xf32> to vector<2x128xf32>
    %111 = arith.negf %110 : vector<2x128xf32>
    %112 = math.exp %111 : vector<2x128xf32>
    %cst_31 = arith.constant 1.000000e+00 : f32
    %113 = vector.broadcast %cst_31 : f32 to vector<2x128xf32>
    %114 = arith.addf %113, %112 : vector<2x128xf32>
    %115 = arith.divf %113, %114 : vector<2x128xf32>
    %116 = vector.extract_strided_slice %103 {offsets = [0, 256], sizes = [2, 128], strides = [1, 1]} : vector<2x512xf32> to vector<2x128xf32>
    %117 = math.tanh %116 : vector<2x128xf32>
    %118 = vector.extract_strided_slice %103 {offsets = [0, 384], sizes = [2, 128], strides = [1, 1]} : vector<2x512xf32> to vector<2x128xf32>
    %119 = arith.negf %118 : vector<2x128xf32>
    %120 = math.exp %119 : vector<2x128xf32>
    %cst_32 = arith.constant 1.000000e+00 : f32
    %121 = vector.broadcast %cst_32 : f32 to vector<2x128xf32>
    %122 = arith.addf %121, %120 : vector<2x128xf32>
    %123 = arith.divf %121, %122 : vector<2x128xf32>
    %124 = arith.mulf %115, %96 : vector<2x128xf32>
    %125 = arith.mulf %109, %117 : vector<2x128xf32>
    %126 = arith.addf %124, %125 : vector<2x128xf32>
    %127 = math.tanh %126 : vector<2x128xf32>
    %128 = arith.mulf %123, %127 : vector<2x128xf32>
    %c6_33 = arith.constant 6 : index
    %c0_34 = arith.constant 0 : index
    %129 = vector.load %arg8[%c6_33, %c0_34] : memref<16x128xf32, #tpu.memory_space<vmem>>, vector<2x128xf32>
    tpu.vector_store %arg8[%c6_33, %c0_34], %128 {strides = array<i32>} : memref<16x128xf32, #tpu.memory_space<vmem>>, vector<2x128xf32>,
    %c8 = arith.constant 8 : index
    %c0_35 = arith.constant 0 : index
    %130 = vector.load %arg9[%c8, %c0_35] : memref<16x512xf32, #tpu.memory_space<vmem>>, vector<2x512xf32>
    %131 = arith.truncf %128 : vector<2x128xf32> to vector<2x128xbf16>
    %cst_36 = arith.constant dense<0.000000e+00> : vector<2x512xf32>
    %132 = tpu.matmul %131, %7, %cst_36 {dimension_numbers = #tpu.dot_dimension_numbers<[1], [0], [0], [1], [0, 0, 1, 1], [], []>} : vector<2x128xbf16>, vector<128x512xbf16>, vector<2x512xf32> -> vector<2x512xf32>
    %133 = arith.addf %130, %132 : vector<2x512xf32>
    %134 = vector.extract_strided_slice %133 {offsets = [0, 0], sizes = [2, 128], strides = [1, 1]} : vector<2x512xf32> to vector<2x128xf32>
    %135 = arith.negf %134 : vector<2x128xf32>
    %136 = math.exp %135 : vector<2x128xf32>
    %cst_37 = arith.constant 1.000000e+00 : f32
    %137 = vector.broadcast %cst_37 : f32 to vector<2x128xf32>
    %138 = arith.addf %137, %136 : vector<2x128xf32>
    %139 = arith.divf %137, %138 : vector<2x128xf32>
    %140 = vector.extract_strided_slice %133 {offsets = [0, 128], sizes = [2, 128], strides = [1, 1]} : vector<2x512xf32> to vector<2x128xf32>
    %141 = arith.negf %140 : vector<2x128xf32>
    %142 = math.exp %141 : vector<2x128xf32>
    %cst_38 = arith.constant 1.000000e+00 : f32
    %143 = vector.broadcast %cst_38 : f32 to vector<2x128xf32>
    %144 = arith.addf %143, %142 : vector<2x128xf32>
    %145 = arith.divf %143, %144 : vector<2x128xf32>
    %146 = vector.extract_strided_slice %133 {offsets = [0, 256], sizes = [2, 128], strides = [1, 1]} : vector<2x512xf32> to vector<2x128xf32>
    %147 = math.tanh %146 : vector<2x128xf32>
    %148 = vector.extract_strided_slice %133 {offsets = [0, 384], sizes = [2, 128], strides = [1, 1]} : vector<2x512xf32> to vector<2x128xf32>
    %149 = arith.negf %148 : vector<2x128xf32>
    %150 = math.exp %149 : vector<2x128xf32>
    %cst_39 = arith.constant 1.000000e+00 : f32
    %151 = vector.broadcast %cst_39 : f32 to vector<2x128xf32>
    %152 = arith.addf %151, %150 : vector<2x128xf32>
    %153 = arith.divf %151, %152 : vector<2x128xf32>
    %154 = arith.mulf %145, %126 : vector<2x128xf32>
    %155 = arith.mulf %139, %147 : vector<2x128xf32>
    %156 = arith.addf %154, %155 : vector<2x128xf32>
    %157 = math.tanh %156 : vector<2x128xf32>
    %158 = arith.mulf %153, %157 : vector<2x128xf32>
    %c8_40 = arith.constant 8 : index
    %c0_41 = arith.constant 0 : index
    %159 = vector.load %arg8[%c8_40, %c0_41] : memref<16x128xf32, #tpu.memory_space<vmem>>, vector<2x128xf32>
    tpu.vector_store %arg8[%c8_40, %c0_41], %158 {strides = array<i32>} : memref<16x128xf32, #tpu.memory_space<vmem>>, vector<2x128xf32>,
    %c10 = arith.constant 10 : index
    %c0_42 = arith.constant 0 : index
    %160 = vector.load %arg9[%c10, %c0_42] : memref<16x512xf32, #tpu.memory_space<vmem>>, vector<2x512xf32>
    %161 = arith.truncf %158 : vector<2x128xf32> to vector<2x128xbf16>
    %cst_43 = arith.constant dense<0.000000e+00> : vector<2x512xf32>
    %162 = tpu.matmul %161, %7, %cst_43 {dimension_numbers = #tpu.dot_dimension_numbers<[1], [0], [0], [1], [0, 0, 1, 1], [], []>} : vector<2x128xbf16>, vector<128x512xbf16>, vector<2x512xf32> -> vector<2x512xf32>
    %163 = arith.addf %160, %162 : vector<2x512xf32>
    %164 = vector.extract_strided_slice %163 {offsets = [0, 0], sizes = [2, 128], strides = [1, 1]} : vector<2x512xf32> to vector<2x128xf32>
    %165 = arith.negf %164 : vector<2x128xf32>
    %166 = math.exp %165 : vector<2x128xf32>
    %cst_44 = arith.constant 1.000000e+00 : f32
    %167 = vector.broadcast %cst_44 : f32 to vector<2x128xf32>
    %168 = arith.addf %167, %166 : vector<2x128xf32>
    %169 = arith.divf %167, %168 : vector<2x128xf32>
    %170 = vector.extract_strided_slice %163 {offsets = [0, 128], sizes = [2, 128], strides = [1, 1]} : vector<2x512xf32> to vector<2x128xf32>
    %171 = arith.negf %170 : vector<2x128xf32>
    %172 = math.exp %171 : vector<2x128xf32>
    %cst_45 = arith.constant 1.000000e+00 : f32
    %173 = vector.broadcast %cst_45 : f32 to vector<2x128xf32>
    %174 = arith.addf %173, %172 : vector<2x128xf32>
    %175 = arith.divf %173, %174 : vector<2x128xf32>
    %176 = vector.extract_strided_slice %163 {offsets = [0, 256], sizes = [2, 128], strides = [1, 1]} : vector<2x512xf32> to vector<2x128xf32>
    %177 = math.tanh %176 : vector<2x128xf32>
    %178 = vector.extract_strided_slice %163 {offsets = [0, 384], sizes = [2, 128], strides = [1, 1]} : vector<2x512xf32> to vector<2x128xf32>
    %179 = arith.negf %178 : vector<2x128xf32>
    %180 = math.exp %179 : vector<2x128xf32>
    %cst_46 = arith.constant 1.000000e+00 : f32
    %181 = vector.broadcast %cst_46 : f32 to vector<2x128xf32>
    %182 = arith.addf %181, %180 : vector<2x128xf32>
    %183 = arith.divf %181, %182 : vector<2x128xf32>
    %184 = arith.mulf %175, %156 : vector<2x128xf32>
    %185 = arith.mulf %169, %177 : vector<2x128xf32>
    %186 = arith.addf %184, %185 : vector<2x128xf32>
    %187 = math.tanh %186 : vector<2x128xf32>
    %188 = arith.mulf %183, %187 : vector<2x128xf32>
    %c10_47 = arith.constant 10 : index
    %c0_48 = arith.constant 0 : index
    %189 = vector.load %arg8[%c10_47, %c0_48] : memref<16x128xf32, #tpu.memory_space<vmem>>, vector<2x128xf32>
    tpu.vector_store %arg8[%c10_47, %c0_48], %188 {strides = array<i32>} : memref<16x128xf32, #tpu.memory_space<vmem>>, vector<2x128xf32>,
    %c12 = arith.constant 12 : index
    %c0_49 = arith.constant 0 : index
    %190 = vector.load %arg9[%c12, %c0_49] : memref<16x512xf32, #tpu.memory_space<vmem>>, vector<2x512xf32>
    %191 = arith.truncf %188 : vector<2x128xf32> to vector<2x128xbf16>
    %cst_50 = arith.constant dense<0.000000e+00> : vector<2x512xf32>
    %192 = tpu.matmul %191, %7, %cst_50 {dimension_numbers = #tpu.dot_dimension_numbers<[1], [0], [0], [1], [0, 0, 1, 1], [], []>} : vector<2x128xbf16>, vector<128x512xbf16>, vector<2x512xf32> -> vector<2x512xf32>
    %193 = arith.addf %190, %192 : vector<2x512xf32>
    %194 = vector.extract_strided_slice %193 {offsets = [0, 0], sizes = [2, 128], strides = [1, 1]} : vector<2x512xf32> to vector<2x128xf32>
    %195 = arith.negf %194 : vector<2x128xf32>
    %196 = math.exp %195 : vector<2x128xf32>
    %cst_51 = arith.constant 1.000000e+00 : f32
    %197 = vector.broadcast %cst_51 : f32 to vector<2x128xf32>
    %198 = arith.addf %197, %196 : vector<2x128xf32>
    %199 = arith.divf %197, %198 : vector<2x128xf32>
    %200 = vector.extract_strided_slice %193 {offsets = [0, 128], sizes = [2, 128], strides = [1, 1]} : vector<2x512xf32> to vector<2x128xf32>
    %201 = arith.negf %200 : vector<2x128xf32>
    %202 = math.exp %201 : vector<2x128xf32>
    %cst_52 = arith.constant 1.000000e+00 : f32
    %203 = vector.broadcast %cst_52 : f32 to vector<2x128xf32>
    %204 = arith.addf %203, %202 : vector<2x128xf32>
    %205 = arith.divf %203, %204 : vector<2x128xf32>
    %206 = vector.extract_strided_slice %193 {offsets = [0, 256], sizes = [2, 128], strides = [1, 1]} : vector<2x512xf32> to vector<2x128xf32>
    %207 = math.tanh %206 : vector<2x128xf32>
    %208 = vector.extract_strided_slice %193 {offsets = [0, 384], sizes = [2, 128], strides = [1, 1]} : vector<2x512xf32> to vector<2x128xf32>
    %209 = arith.negf %208 : vector<2x128xf32>
    %210 = math.exp %209 : vector<2x128xf32>
    %cst_53 = arith.constant 1.000000e+00 : f32
    %211 = vector.broadcast %cst_53 : f32 to vector<2x128xf32>
    %212 = arith.addf %211, %210 : vector<2x128xf32>
    %213 = arith.divf %211, %212 : vector<2x128xf32>
    %214 = arith.mulf %205, %186 : vector<2x128xf32>
    %215 = arith.mulf %199, %207 : vector<2x128xf32>
    %216 = arith.addf %214, %215 : vector<2x128xf32>
    %217 = math.tanh %216 : vector<2x128xf32>
    %218 = arith.mulf %213, %217 : vector<2x128xf32>
    %c12_54 = arith.constant 12 : index
    %c0_55 = arith.constant 0 : index
    %219 = vector.load %arg8[%c12_54, %c0_55] : memref<16x128xf32, #tpu.memory_space<vmem>>, vector<2x128xf32>
    tpu.vector_store %arg8[%c12_54, %c0_55], %218 {strides = array<i32>} : memref<16x128xf32, #tpu.memory_space<vmem>>, vector<2x128xf32>,
    %c14 = arith.constant 14 : index
    %c0_56 = arith.constant 0 : index
    %220 = vector.load %arg9[%c14, %c0_56] : memref<16x512xf32, #tpu.memory_space<vmem>>, vector<2x512xf32>
    %221 = arith.truncf %218 : vector<2x128xf32> to vector<2x128xbf16>
    %cst_57 = arith.constant dense<0.000000e+00> : vector<2x512xf32>
    %222 = tpu.matmul %221, %7, %cst_57 {dimension_numbers = #tpu.dot_dimension_numbers<[1], [0], [0], [1], [0, 0, 1, 1], [], []>} : vector<2x128xbf16>, vector<128x512xbf16>, vector<2x512xf32> -> vector<2x512xf32>
    %223 = arith.addf %220, %222 : vector<2x512xf32>
    %224 = vector.extract_strided_slice %223 {offsets = [0, 0], sizes = [2, 128], strides = [1, 1]} : vector<2x512xf32> to vector<2x128xf32>
    %225 = arith.negf %224 : vector<2x128xf32>
    %226 = math.exp %225 : vector<2x128xf32>
    %cst_58 = arith.constant 1.000000e+00 : f32
    %227 = vector.broadcast %cst_58 : f32 to vector<2x128xf32>
    %228 = arith.addf %227, %226 : vector<2x128xf32>
    %229 = arith.divf %227, %228 : vector<2x128xf32>
    %230 = vector.extract_strided_slice %223 {offsets = [0, 128], sizes = [2, 128], strides = [1, 1]} : vector<2x512xf32> to vector<2x128xf32>
    %231 = arith.negf %230 : vector<2x128xf32>
    %232 = math.exp %231 : vector<2x128xf32>
    %cst_59 = arith.constant 1.000000e+00 : f32
    %233 = vector.broadcast %cst_59 : f32 to vector<2x128xf32>
    %234 = arith.addf %233, %232 : vector<2x128xf32>
    %235 = arith.divf %233, %234 : vector<2x128xf32>
    %236 = vector.extract_strided_slice %223 {offsets = [0, 256], sizes = [2, 128], strides = [1, 1]} : vector<2x512xf32> to vector<2x128xf32>
    %237 = math.tanh %236 : vector<2x128xf32>
    %238 = vector.extract_strided_slice %223 {offsets = [0, 384], sizes = [2, 128], strides = [1, 1]} : vector<2x512xf32> to vector<2x128xf32>
    %239 = arith.negf %238 : vector<2x128xf32>
    %240 = math.exp %239 : vector<2x128xf32>
    %cst_60 = arith.constant 1.000000e+00 : f32
    %241 = vector.broadcast %cst_60 : f32 to vector<2x128xf32>
    %242 = arith.addf %241, %240 : vector<2x128xf32>
    %243 = arith.divf %241, %242 : vector<2x128xf32>
    %244 = arith.mulf %235, %216 : vector<2x128xf32>
    %245 = arith.mulf %229, %237 : vector<2x128xf32>
    %246 = arith.addf %244, %245 : vector<2x128xf32>
    %247 = math.tanh %246 : vector<2x128xf32>
    %248 = arith.mulf %243, %247 : vector<2x128xf32>
    %c14_61 = arith.constant 14 : index
    %c0_62 = arith.constant 0 : index
    %249 = vector.load %arg8[%c14_61, %c0_62] : memref<16x128xf32, #tpu.memory_space<vmem>>, vector<2x128xf32>
    tpu.vector_store %arg8[%c14_61, %c0_62], %248 {strides = array<i32>} : memref<16x128xf32, #tpu.memory_space<vmem>>, vector<2x128xf32>,
    %c9_i32 = arith.constant 9 : i32
    %250 = arith.cmpi eq, %arg0, %c9_i32 : i32
    %251 = arith.extui %250 : i1 to i32
    %c0_i32_63 = arith.constant 0 : i32
    %252 = arith.cmpi ne, %251, %c0_i32_63 : i32
    scf.if %252 {
      %c0_64 = arith.constant 0 : index
      %c0_65 = arith.constant 0 : index
      %253 = vector.load %arg5[%c0_64, %c0_65] : memref<128x128xf32, #tpu.memory_space<vmem>>, vector<128x128xf32>
      %cst_66 = arith.constant dense<0.000000e+00> : vector<2x128xf32>
      %254 = tpu.matmul %248, %253, %cst_66 {dimension_numbers = #tpu.dot_dimension_numbers<[1], [0], [0], [1], [0, 0, 1, 1], [], []>} : vector<2x128xf32>, vector<128x128xf32>, vector<2x128xf32> -> vector<2x128xf32>
      %c0_67 = arith.constant 0 : index
      %c0_68 = arith.constant 0 : index
      %255 = vector.load %arg6[%c0_67, %c0_68] : memref<1x128xf32, #tpu.memory_space<vmem>>, vector<1x128xf32>
      %256 = vector.broadcast %255 : vector<1x128xf32> to vector<2x128xf32>
      %257 = arith.addf %254, %256 : vector<2x128xf32>
      %c0_69 = arith.constant 0 : index
      %c0_70 = arith.constant 0 : index
      %258 = vector.load %arg7[%c0_69, %c0_70] : memref<2x128xf32, #tpu.memory_space<vmem>>, vector<2x128xf32>
      tpu.vector_store %arg7[%c0_69, %c0_70], %257 {strides = array<i32>} : memref<2x128xf32, #tpu.memory_space<vmem>>, vector<2x128xf32>,
    } else {
    }
    return
  }
  func.func @transform_0(%arg0: i32) -> (i32, i32) {
    %c0_i32 = arith.constant 0 : i32
    %c0_i32_0 = arith.constant 0 : i32
    %c0_i32_1 = arith.constant 0 : i32
    return %c0_i32, %c0_i32_0 : i32, i32
  }
  func.func @transform_1(%arg0: i32) -> (i32, i32, i32) {
    %c0_i32 = arith.constant 0 : i32
    %c0_i32_0 = arith.constant 0 : i32
    %c0_i32_1 = arith.constant 0 : i32
    return %arg0, %c0_i32, %c0_i32_0 : i32, i32, i32
  }
  func.func @transform_2(%arg0: i32) -> (i32, i32, i32) {
    %c0_i32 = arith.constant 0 : i32
    %c0_i32_0 = arith.constant 0 : i32
    %c0_i32_1 = arith.constant 0 : i32
    return %arg0, %c0_i32, %c0_i32_0 : i32, i32, i32
  }
  func.func @transform_3(%arg0: i32) -> (i32, i32, i32) {
    %c0_i32 = arith.constant 0 : i32
    %c0_i32_0 = arith.constant 0 : i32
    %c0_i32_1 = arith.constant 0 : i32
    return %arg0, %c0_i32, %c0_i32_0 : i32, i32, i32
  }
  func.func @transform_4(%arg0: i32) -> (i32, i32) {
    %c0_i32 = arith.constant 0 : i32
    %c0_i32_0 = arith.constant 0 : i32
    %c0_i32_1 = arith.constant 0 : i32
    return %c0_i32, %c0_i32_0 : i32, i32
  }
  func.func @transform_5(%arg0: i32) -> (i32, i32) {
    %c0_i32 = arith.constant 0 : i32
    %c0_i32_0 = arith.constant 0 : i32
    %c0_i32_1 = arith.constant 0 : i32
    return %c0_i32, %c0_i32_0 : i32, i32
  }
  func.func @transform_6(%arg0: i32) -> (i32, i32) {
    %c0_i32 = arith.constant 0 : i32
    %c0_i32_0 = arith.constant 0 : i32
    %c0_i32_1 = arith.constant 0 : i32
    return %c0_i32, %c0_i32_0 : i32, i32
  }
}

</mosaic_0001>

<llo_original>
// kernel: tpu_custom_call.1
$region0: #{tpu_custom_call.1}
  #allocation0 [shape = 'u32[]', space=smem, size = 0x4, offset = 0x4, fixed_abs, tag = 'smem constant byte address 0x4 - core index']
  #allocation1 [shape = 'u32[144,128]{1,0:T(1,128)}', space=vmem, size = 0x12000, scoped, tag = 'internal scratch']
  #allocation2 [shape = 'f32[16,128]{1,0:T(8,128)}', space=vmem, size = 0x2000, scoped, tag = 'scratch operand']
  #allocation3 [shape = 'f32[16,512]{1,0:T(8,128)}', space=vmem, size = 0x8000, scoped, tag = 'scratch operand']
  %s0 = inlined_call_operand.hbm [shape: f32[16,512], index: 0, kind: input, shape index: {}]
  %s1 = inlined_call_operand.hbm [shape: bf16[10,128,512], index: 1, kind: input, shape index: {}]
  %s2 = inlined_call_operand.hbm [shape: bf16[10,128,512], index: 2, kind: input, shape index: {}]
  %s3 = inlined_call_operand.hbm [shape: f32[10,1,512], index: 3, kind: input, shape index: {}]
  %s4 = inlined_call_operand.hbm [shape: f32[128,128], index: 4, kind: input, shape index: {}]
  %s5 = inlined_call_operand.hbm [shape: f32[1,128], index: 5, kind: input, shape index: {}]
  %s6 = inlined_call_operand.hbm [shape: f32[2,128], index: 6, kind: output, shape index: {}]
  %s7 = sld [smem:[#allocation0]]
  $region93: #{tpu_custom_call.1} parent=0
    _
  %s9 = ssub.s32 1, %s7
  %s10 = scalar_select 0, %s9, %s7
  $region1: #{tpu_custom_call.1} parent=0
    #allocation4 [shape = 'u8[32768]{0}', space=vmem, size = 0x8000, scoped, tag = 'input window, operand 0, single buffered']
    #allocation5 [shape = 's32[2]{0}', space=sflag, size = 0x8, scoped, tag = 'scoped memory for tpu_custom_call.1']
    #allocation6 [shape = 's32[2]{0}', space=sflag, size = 0x8, scoped, tag = 'scoped memory for tpu_custom_call.1']
    #allocation7 [shape = 'u8[262144]{0}', space=vmem, size = 0x40000, scoped, tag = 'input window, operand 1']
    #allocation8 [shape = 's32[2]{0}', space=sflag, size = 0x8, scoped, tag = 'scoped memory for tpu_custom_call.1']
    #allocation9 [shape = 'u8[262144]{0}', space=vmem, size = 0x40000, scoped, tag = 'input window, operand 2']
    #allocation10 [shape = 'u8[4096]{0}', space=vmem, size = 0x1000, scoped, tag = 'input window, operand 3']
    #allocation11 [shape = 's32[2]{0}', space=sflag, size = 0x8, scoped, tag = 'scoped memory for tpu_custom_call.1']
    #allocation12 [shape = 'u8[65536]{0}', space=vmem, size = 0x10000, scoped, tag = 'input window, operand 4, single buffered']
    #allocation13 [shape = 'u8[512]{0}', space=vmem, size = 0x400, scoped, tag = 'input window, operand 5, single buffered']
    #allocation14 [shape = 's32[1]{0}', space=sflag, size = 0x4, scoped, tag = 'scoped memory for tpu_custom_call.1']
    #allocation15 [shape = 'u8[1024]{0}', space=vmem, size = 0x400, scoped, tag = 'output window, operand 0, single buffered']
    %11 = vsyncpa [#allocation5], 0
    %12 = vsyncpa [#allocation8], 0
    %s13 = scalar_lea.sflag [#allocation8], 1
    %14 = vsyncpa %s13, 0
    %15 = vsyncpa [#allocation11], 0
    %s16 = scalar_lea.sflag [#allocation11], 1
    %17 = vsyncpa %s16, 0
    %18 = vsyncpa [#allocation14], 0
    %19 = vsyncpa [#allocation6], 0
    loop: start=0, step=1, limit=12
    $region2: #{tpu_custom_call.1} parent=1 // loop_pre_header
      _
    $region3: #{tpu_custom_call.1} parent=1 // loop_header
      %s21 = sphi 0, %s25
      %p22 = scmp.ge.s32.totalorder %s21, 12
      %s29 = sphi 0, %s29
      %s31 = sphi 0, %s29
      %s32 = sphi 0, %s31
      %s46 = sphi 0, %s32
      %s52 = sphi 0, %s54
      %s55 = sphi 0, %s52
      %s56 = sphi 0, %s55
      %s72 = sphi 0, %s56
      %s78 = sphi 0, %s80
      %s81 = sphi 0, %s78
      %s82 = sphi 0, %s81
      %s98 = sphi 0, %s82
      %s104 = sphi 0, %s106
      %s107 = sphi 0, %s104
      %s108 = sphi 0, %s107
      %s124 = sphi 0, %s108
      %s128 = sphi 0, %s128
      %s130 = sphi 0, %s128
      %s131 = sphi 0, %s130
      %s145 = sphi 0, %s131
      %s149 = sphi 0, %s149
      %s151 = sphi 0, %s149
      %s152 = sphi 0, %s151
      %s166 = sphi 0, %s152
      %s170 = sphi 0, %s170
      %s172 = sphi 0, %s170
      %s173 = sphi 0, %s172
      %s187 = sphi 0, %s173
    $region4: #{tpu_custom_call.1} parent=1 // loop_header_branch
      %24 = sbr.rel (%p22) target = $region8
    $region5: #{tpu_custom_call.1} parent=1 // loop_body
      %s26 = ssub.s32 %s21, 1
      %s27 = ssub.s32 %s21, 2
      %s28 = sadd.s32 %s21, 1
      %s30 = sadd.s32 %s29, 1
      %p33 = scmp.eq.s32.totalorder %s21, 9
      %p34 = scmp.ne.s32.totalorder %s29, %s31
      %p35 = scmp.eq.s32.totalorder %s21, 0
      %p36 = por %p34, %p35
      %p37 = scmp.ne.s32.totalorder %s29, %s31
      %p38 = scmp.eq.s32.totalorder %s26, 9
      %p39 = por %p37, %p38
      %p40 = scmp.ne.s32.totalorder %s31, %s32
      %p41 = scmp.eq.s32.totalorder %s26, 0
      %p42 = por %p40, %p41
      %p43 = scmp.ne.s32.totalorder %s31, %s32
      %p44 = scmp.eq.s32.totalorder %s27, 9
      %p45 = por %p43, %p44
      %p47 = scmp.ne.s32.totalorder %s32, %s46
      %p48 = scmp.eq.s32.totalorder %s27, 0
      %p49 = por %p47, %p48
      %s50 = ssub.s32 %s21, %s28
      %p51 = scmp.eq.s32.totalorder %s50, 0
      %s53 = sadd.s32 %s52, 1
      %s54 = scalar_select %p51, %s52, %s53
      %p57 = pneg %p51
      %p58 = scmp.eq.s32.totalorder %s21, 9
      %p59 = por %p57, %p58
      %p60 = scmp.ne.s32.totalorder %s52, %s55
      %p61 = scmp.eq.s32.totalorder %s21, 0
      %p62 = por %p60, %p61
      %p63 = scmp.ne.s32.totalorder %s52, %s55
      %p64 = scmp.eq.s32.totalorder %s26, 9
      %p65 = por %p63, %p64
      %p66 = scmp.ne.s32.totalorder %s55, %s56
      %p67 = scmp.eq.s32.totalorder %s26, 0
      %p68 = por %p66, %p67
      %p69 = scmp.ne.s32.totalorder %s55, %s56
      %p70 = scmp.eq.s32.totalorder %s27, 9
      %p71 = por %p69, %p70
      %p73 = scmp.ne.s32.totalorder %s56, %s72
      %p74 = scmp.eq.s32.totalorder %s27, 0
      %p75 = por %p73, %p74
      %s76 = ssub.s32 %s21, %s28
      %p77 = scmp.eq.s32.totalorder %s76, 0
      %s79 = sadd.s32 %s78, 1
      %s80 = scalar_select %p77, %s78, %s79
      %p83 = pneg %p77
      %p84 = scmp.eq.s32.totalorder %s21, 9
      %p85 = por %p83, %p84
      %p86 = scmp.ne.s32.totalorder %s78, %s81
      %p87 = scmp.eq.s32.totalorder %s21, 0
      %p88 = por %p86, %p87
      %p89 = scmp.ne.s32.totalorder %s78, %s81
      %p90 = scmp.eq.s32.totalorder %s26, 9
      %p91 = por %p89, %p90
      %p92 = scmp.ne.s32.totalorder %s81, %s82
      %p93 = scmp.eq.s32.totalorder %s26, 0
      %p94 = por %p92, %p93
      %p95 = scmp.ne.s32.totalorder %s81, %s82
      %p96 = scmp.eq.s32.totalorder %s27, 9
      %p97 = por %p95, %p96
      %p99 = scmp.ne.s32.totalorder %s82, %s98
      %p100 = scmp.eq.s32.totalorder %s27, 0
      %p101 = por %p99, %p100
      %s102 = ssub.s32 %s21, %s28
      %p103 = scmp.eq.s32.totalorder %s102, 0
      %s105 = sadd.s32 %s104, 1
      %s106 = scalar_select %p103, %s104, %s105
      %p109 = pneg %p103
      %p110 = scmp.eq.s32.totalorder %s21, 9
      %p111 = por %p109, %p110
      %p112 = scmp.ne.s32.totalorder %s104, %s107
      %p113 = scmp.eq.s32.totalorder %s21, 0
      %p114 = por %p112, %p113
      %p115 = scmp.ne.s32.totalorder %s104, %s107
      %p116 = scmp.eq.s32.totalorder %s26, 9
      %p117 = por %p115, %p116
      %p118 = scmp.ne.s32.totalorder %s107, %s108
      %p119 = scmp.eq.s32.totalorder %s26, 0
      %p120 = por %p118, %p119
      %p121 = scmp.ne.s32.totalorder %s107, %s108
      %p122 = scmp.eq.s32.totalorder %s27, 9
      %p123 = por %p121, %p122
      %p125 = scmp.ne.s32.totalorder %s108, %s124
      %p126 = scmp.eq.s32.totalorder %s27, 0
      %p127 = por %p125, %p126
      %s129 = sadd.s32 %s128, 1
      %p132 = scmp.eq.s32.totalorder %s21, 9
      %p133 = scmp.ne.s32.totalorder %s128, %s130
      %p134 = scmp.eq.s32.totalorder %s21, 0
      %p135 = por %p133, %p134
      %p136 = scmp.ne.s32.totalorder %s128, %s130
      %p137 = scmp.eq.s32.totalorder %s26, 9
      %p138 = por %p136, %p137
      %p139 = scmp.ne.s32.totalorder %s130, %s131
      %p140 = scmp.eq.s32.totalorder %s26, 0
      %p141 = por %p139, %p140
      %p142 = scmp.ne.s32.totalorder %s130, %s131
      %p143 = scmp.eq.s32.totalorder %s27, 9
      %p144 = por %p142, %p143
      %p146 = scmp.ne.s32.totalorder %s131, %s145
      %p147 = scmp.eq.s32.totalorder %s27, 0
      %p148 = por %p146, %p147
      %s150 = sadd.s32 %s149, 1
      %p153 = scmp.eq.s32.totalorder %s21, 9
      %p154 = scmp.ne.s32.totalorder %s149, %s151
      %p155 = scmp.eq.s32.totalorder %s21, 0
      %p156 = por %p154, %p155
      %p157 = scmp.ne.s32.totalorder %s149, %s151
      %p158 = scmp.eq.s32.totalorder %s26, 9
      %p159 = por %p157, %p158
      %p160 = scmp.ne.s32.totalorder %s151, %s152
      %p161 = scmp.eq.s32.totalorder %s26, 0
      %p162 = por %p160, %p161
      %p163 = scmp.ne.s32.totalorder %s151, %s152
      %p164 = scmp.eq.s32.totalorder %s27, 9
      %p165 = por %p163, %p164
      %p167 = scmp.ne.s32.totalorder %s152, %s166
      %p168 = scmp.eq.s32.totalorder %s27, 0
      %p169 = por %p167, %p168
      %s171 = sadd.s32 %s170, 1
      %p174 = scmp.eq.s32.totalorder %s21, 9
      %p175 = scmp.ne.s32.totalorder %s170, %s172
      %p176 = scmp.eq.s32.totalorder %s21, 0
      %p177 = por %p175, %p176
      %p178 = scmp.ne.s32.totalorder %s170, %s172
      %p179 = scmp.eq.s32.totalorder %s26, 9
      %p180 = por %p178, %p179
      %p181 = scmp.ne.s32.totalorder %s172, %s173
      %p182 = scmp.eq.s32.totalorder %s26, 0
      %p183 = por %p181, %p182
      %p184 = scmp.ne.s32.totalorder %s172, %s173
      %p185 = scmp.eq.s32.totalorder %s27, 9
      %p186 = por %p184, %p185
      %p188 = scmp.ne.s32.totalorder %s173, %s187
      %p189 = scmp.eq.s32.totalorder %s27, 0
      %p190 = por %p188, %p189
      %p191 = scmp.le.s32.totalorder 1, %s21
      %p192 = scmp.lt.s32.totalorder %s21, 11
      %p193 = pnand %p191, %p192
      %p194 = pneg %p193
      // Predicated region
      $region9: #{tpu_custom_call.1} parent=5 // pred_check
        _
      $region10: #{tpu_custom_call.1} parent=5 // pred_check_branch
        %196 = sbr.rel (%p193) target = $region12
      $region11: #{tpu_custom_call.1} parent=5 // pred_region
        %s197 = ssub.s32 %s21, 1
        // Predicated region
        $region13: #{tpu_custom_call.1} parent=11 // pred_check
          %p198 = pneg %p42
        $region14: #{tpu_custom_call.1} parent=11 // pred_check_branch
          %200 = sbr.rel (%p198) target = $region16
        $region15: #{tpu_custom_call.1} parent=11 // pred_region
          %s202 = ssub.s32 1024, 1024
          %203 = vsyncadd [#allocation5], %s202
          %s204 = sshll.u32 [#allocation4], 4
          %s205 = int_to_ptr.vmem [resolvable:$true] %s204
          %210 = dma.hbm_to_vmem [thread:$0]  %s0, 1024, %s205, [#allocation5], 512, 512, 32
        $region16: #{tpu_custom_call.1} parent=11 // pred_fallthru
          _
        // Predicated region
        $region17: #{tpu_custom_call.1} parent=11 // pred_check
          %p211 = pneg %p141
        $region18: #{tpu_custom_call.1} parent=11 // pred_check_branch
          %213 = sbr.rel (%p211) target = $region20
        $region19: #{tpu_custom_call.1} parent=11 // pred_region
          %s215 = ssub.s32 2048, 2048
          %216 = vsyncadd [#allocation11], %s215
          %s217 = sshll.u32 [#allocation12], 4
          %s218 = int_to_ptr.vmem [resolvable:$true] %s217
          %223 = dma.hbm_to_vmem [thread:$0]  %s4, 2048, %s218, [#allocation11], 128, 128, 8
        $region20: #{tpu_custom_call.1} parent=11 // pred_fallthru
          _
        // Predicated region
        $region21: #{tpu_custom_call.1} parent=11 // pred_check
          %p224 = pneg %p162
        $region22: #{tpu_custom_call.1} parent=11 // pred_check_branch
          %226 = sbr.rel (%p224) target = $region24
        $region23: #{tpu_custom_call.1} parent=11 // pred_region
          %s228 = ssub.s32 16, 16
          %229 = vsyncadd [#allocation14], %s228
          %s231 = sshll.u32 [#allocation13], 4
          %s232 = int_to_ptr.vmem [resolvable:$true] %s231
          %234 = dma.hbm_to_vmem [thread:$0]  %s5, 16, %s232, [#allocation14]
        $region24: #{tpu_custom_call.1} parent=11 // pred_fallthru
          _
      $region12: #{tpu_custom_call.1} parent=5 // pred_fallthru
        _
      %p235 = scmp.lt.s32.totalorder %s21, 10
      // Predicated region
      $region25: #{tpu_custom_call.1} parent=5 // pred_check
        %p236 = pneg %p235
      $region26: #{tpu_custom_call.1} parent=5 // pred_check_branch
        %238 = sbr.rel (%p236) target = $region28
      $region27: #{tpu_custom_call.1} parent=5 // pred_region
        // Predicated region
        $region29: #{tpu_custom_call.1} parent=27 // pred_check
          %p239 = pneg %p62
        $region30: #{tpu_custom_call.1} parent=27 // pred_check_branch
          %241 = sbr.rel (%p239) target = $region32
        $region31: #{tpu_custom_call.1} parent=27 // pred_region
          %s242 = sand.u32 %s21, 1
          %s243 = scalar_lea.sflag [#allocation8], %s242
          %s244 = sand.u32 %s52, 1
          %s245 = smul.addr %s244, 256
          %s246 = scalar_lea.vmem [#allocation7], %s245
          %s248 = ssub.s32 4096, 4096
          %249 = vsyncadd %s243, %s248
          %s250 = smul.addr %s21, 64
          %s251 = smul.addr %s250, 64
          %s252 = scalar_lea.hbm %s1, %s251
          %s253 = sshll.u32 %s246, 4
          %s254 = int_to_ptr.vmem [resolvable:$true] %s253
          %259 = dma.hbm_to_vmem [thread:$0]  %s252, 4096, %s254, %s243, 256, 256, 16
        $region32: #{tpu_custom_call.1} parent=27 // pred_fallthru
          _
        // Predicated region
        $region33: #{tpu_custom_call.1} parent=27 // pred_check
          %p260 = pneg %p88
        $region34: #{tpu_custom_call.1} parent=27 // pred_check_branch
          %262 = sbr.rel (%p260) target = $region36
        $region35: #{tpu_custom_call.1} parent=27 // pred_region
          %s263 = sand.u32 %s21, 1
          %s264 = scalar_lea.sflag [#allocation8], %s263
          %s265 = sand.u32 %s78, 1
          %s266 = smul.addr %s265, 256
          %s267 = scalar_lea.vmem [#allocation9], %s266
          %s269 = ssub.s32 4096, 4096
          %270 = vsyncadd %s264, %s269
          %s271 = smul.addr %s21, 64
          %s272 = smul.addr %s271, 64
          %s273 = scalar_lea.hbm %s2, %s272
          %s274 = sshll.u32 %s267, 4
          %s275 = int_to_ptr.vmem [resolvable:$true] %s274
          %280 = dma.hbm_to_vmem [thread:$0]  %s273, 4096, %s275, %s264, 256, 256, 16
        $region36: #{tpu_custom_call.1} parent=27 // pred_fallthru
          _
        // Predicated region
        $region37: #{tpu_custom_call.1} parent=27 // pred_check
          %p281 = pneg %p114
        $region38: #{tpu_custom_call.1} parent=27 // pred_check_branch
          %283 = sbr.rel (%p281) target = $region40
        $region39: #{tpu_custom_call.1} parent=27 // pred_region
          %s284 = sand.u32 %s21, 1
          %s285 = scalar_lea.sflag [#allocation11], %s284
          %s286 = sand.u32 %s104, 1
          %s287 = smul.addr %s286, 4
          %s288 = scalar_lea.vmem [#allocation10], %s287
          %s290 = ssub.s32 64, 64
          %291 = vsyncadd %s285, %s290
          %s292 = smul.addr %s21, 4
          %s293 = smul.addr %s292, 16
          %s294 = scalar_lea.hbm %s3, %s293
          %s296 = sshll.u32 %s288, 4
          %s297 = int_to_ptr.vmem [resolvable:$true] %s296
          %299 = dma.hbm_to_vmem [thread:$0]  %s294, 64, %s297, %s285
        $region40: #{tpu_custom_call.1} parent=27 // pred_fallthru
          _
      $region28: #{tpu_custom_call.1} parent=5 // pred_fallthru
        _
      %p300 = scmp.le.s32.totalorder 1, %s21
      %p301 = scmp.lt.s32.totalorder %s21, 11
      %p302 = pnand %p300, %p301
      %p303 = pneg %p302
      // Predicated region
      $region41: #{tpu_custom_call.1} parent=5 // pred_check
        _
      $region42: #{tpu_custom_call.1} parent=5 // pred_check_branch
        %305 = sbr.rel (%p302) target = $region44
      $region43: #{tpu_custom_call.1} parent=5 // pred_region
        %s306 = ssub.s32 %s21, 1
        // Predicated region
        $region45: #{tpu_custom_call.1} parent=43 // pred_check
          %p307 = pneg %p42
        $region46: #{tpu_custom_call.1} parent=43 // pred_check_branch
          %309 = sbr.rel (%p307) target = $region48
        $region47: #{tpu_custom_call.1} parent=43 // pred_region
          %310 = dma.done [#allocation5], 1024
        $region48: #{tpu_custom_call.1} parent=43 // pred_fallthru
          _
        %s311 = sand.u32 %s26, 1
        %s312 = scalar_lea.sflag [#allocation8], %s311
        %s313 = sand.u32 %s55, 1
        %s314 = smul.addr %s313, 256
        %s315 = scalar_lea.vmem [#allocation7], %s314
        // Predicated region
        $region49: #{tpu_custom_call.1} parent=43 // pred_check
          %p316 = pneg %p68
        $region50: #{tpu_custom_call.1} parent=43 // pred_check_branch
          %318 = sbr.rel (%p316) target = $region52
        $region51: #{tpu_custom_call.1} parent=43 // pred_region
          %319 = dma.done %s312, 4096
        $region52: #{tpu_custom_call.1} parent=43 // pred_fallthru
          _
        %s320 = sand.u32 %s26, 1
        %s321 = scalar_lea.sflag [#allocation8], %s320
        %s322 = sand.u32 %s81, 1
        %s323 = smul.addr %s322, 256
        %s324 = scalar_lea.vmem [#allocation9], %s323
        // Predicated region
        $region53: #{tpu_custom_call.1} parent=43 // pred_check
          %p325 = pneg %p94
        $region54: #{tpu_custom_call.1} parent=43 // pred_check_branch
          %327 = sbr.rel (%p325) target = $region56
        $region55: #{tpu_custom_call.1} parent=43 // pred_region
          %328 = dma.done %s321, 4096
        $region56: #{tpu_custom_call.1} parent=43 // pred_fallthru
          _
        %s329 = sand.u32 %s26, 1
        %s330 = scalar_lea.sflag [#allocation11], %s329
        %s331 = sand.u32 %s107, 1
        %s332 = smul.addr %s331, 4
        %s333 = scalar_lea.vmem [#allocation10], %s332
        // Predicated region
        $region57: #{tpu_custom_call.1} parent=43 // pred_check
          %p334 = pneg %p120
        $region58: #{tpu_custom_call.1} parent=43 // pred_check_branch
          %336 = sbr.rel (%p334) target = $region60
        $region59: #{tpu_custom_call.1} parent=43 // pred_region
          %337 = dma.done %s330, 64
        $region60: #{tpu_custom_call.1} parent=43 // pred_fallthru
          _
        // Predicated region
        $region61: #{tpu_custom_call.1} parent=43 // pred_check
          %p338 = pneg %p141
        $region62: #{tpu_custom_call.1} parent=43 // pred_check_branch
          %340 = sbr.rel (%p338) target = $region64
        $region63: #{tpu_custom_call.1} parent=43 // pred_region
          %341 = dma.done [#allocation11], 2048
        $region64: #{tpu_custom_call.1} parent=43 // pred_fallthru
          _
        // Predicated region
        $region65: #{tpu_custom_call.1} parent=43 // pred_check
          %p342 = pneg %p162
        $region66: #{tpu_custom_call.1} parent=43 // pred_check_branch
          %344 = sbr.rel (%p342) target = $region68
        $region67: #{tpu_custom_call.1} parent=43 // pred_region
          %345 = dma.done [#allocation14], 16
        $region68: #{tpu_custom_call.1} parent=43 // pred_fallthru
          _
        %p346 = pneg %p42
        %p347 = pneg %p39
        %s348 = sand.u32 %s26, 1
        %s349 = scalar_lea.sflag [#allocation8], %s348
        %s350 = sand.u32 %s55, 1
        %s351 = smul.addr %s350, 256
        %s352 = scalar_lea.vmem [#allocation7], %s351
        %p353 = pneg %p68
        %p354 = pneg %p65
        %s355 = sand.u32 %s26, 1
        %s356 = scalar_lea.sflag [#allocation8], %s355
        %s357 = sand.u32 %s81, 1
        %s358 = smul.addr %s357, 256
        %s359 = scalar_lea.vmem [#allocation9], %s358
        %p360 = pneg %p94
        %p361 = pneg %p91
        %s362 = sand.u32 %s26, 1
        %s363 = scalar_lea.sflag [#allocation11], %s362
        %s364 = sand.u32 %s107, 1
        %s365 = smul.addr %s364, 4
        %s366 = scalar_lea.vmem [#allocation10], %s365
        %p367 = pneg %p120
        %p368 = pneg %p117
        %p369 = pneg %p141
        %p370 = pneg %p138
        %p371 = pneg %p162
        %p372 = pneg %p159
        %p373 = pneg %p183
        %p374 = pneg %p180
        %p376 = scmp.eq.s32.totalorder %s26, 0
        // Predicated region
        $region69: #{tpu_custom_call.1} parent=43 // pred_check
          %p377 = pneg %p376
        $region70: #{tpu_custom_call.1} parent=43 // pred_check_branch
          %379 = sbr.rel (%p377) target = $region72
        $region71: #{tpu_custom_call.1} parent=43 // pred_region
          %v380 = vld [vmem:[#allocation4] sm:$0xff]
          %v381 = vld [vmem:[#allocation4 + $0x8] sm:$0xff]
          %v382 = vld [vmem:[#allocation4 + $0x10] sm:$0xff]
          %v383 = vld [vmem:[#allocation4 + $0x18] sm:$0xff]
          %v384 = vld [vmem:[#allocation4 + $0x20] sm:$0xff]
          %v385 = vld [vmem:[#allocation4 + $0x28] sm:$0xff]
          %v386 = vld [vmem:[#allocation4 + $0x30] sm:$0xff]
          %v387 = vld [vmem:[#allocation4 + $0x38] sm:$0xff]
          %388 = vst [vmem:[#allocation3] sm:$0xff] %v380
          %389 = vst [vmem:[#allocation3 + $0x8] sm:$0xff] %v381
          %390 = vst [vmem:[#allocation3 + $0x10] sm:$0xff] %v382
          %391 = vst [vmem:[#allocation3 + $0x18] sm:$0xff] %v383
          %392 = vst [vmem:[#allocation3 + $0x20] sm:$0xff] %v384
          %393 = vst [vmem:[#allocation3 + $0x28] sm:$0xff] %v385
          %394 = vst [vmem:[#allocation3 + $0x30] sm:$0xff] %v386
          %395 = vst [vmem:[#allocation3 + $0x38] sm:$0xff] %v387
        $region72: #{tpu_custom_call.1} parent=43 // pred_fallthru
          _
        %p396 = scmp.gt.s32.totalorder %s26, 0
        // Predicated region
        $region73: #{tpu_custom_call.1} parent=43 // pred_check
          %p397 = pneg %p396
        $region74: #{tpu_custom_call.1} parent=43 // pred_check_branch
          %399 = sbr.rel (%p397) target = $region76
        $region75: #{tpu_custom_call.1} parent=43 // pred_region
          %v400 = vld [vmem:[#allocation2] sm:$0xff]
          %v401 = vld [vmem:[#allocation2 + $0x8] sm:$0xff]
          %v402 = vpack.c.bf16 %v401, %v400
          %v403 = vld [vmem:[%s315] sm:$0xff]
          %v404 = vld [vmem:[%s315 + $0x8] sm:$0xff]
          %v405 = vld [vmem:[%s315 + $0x10] sm:$0xff]
          %v406 = vld [vmem:[%s315 + $0x18] sm:$0xff]
          %v407 = vld [vmem:[%s315 + $0x20] sm:$0xff]
          %v408 = vld [vmem:[%s315 + $0x28] sm:$0xff]
          %v409 = vld [vmem:[%s315 + $0x30] sm:$0xff]
          %v410 = vld [vmem:[%s315 + $0x38] sm:$0xff]
          %v411 = vld [vmem:[%s315 + $0x40] sm:$0xff]
          %v412 = vld [vmem:[%s315 + $0x48] sm:$0xff]
          %v413 = vld [vmem:[%s315 + $0x50] sm:$0xff]
          %v414 = vld [vmem:[%s315 + $0x58] sm:$0xff]
          %v415 = vld [vmem:[%s315 + $0x60] sm:$0xff]
          %v416 = vld [vmem:[%s315 + $0x68] sm:$0xff]
          %v417 = vld [vmem:[%s315 + $0x70] sm:$0xff]
          %v418 = vld [vmem:[%s315 + $0x78] sm:$0xff]
          %v419 = vld [vmem:[%s315 + $0x80] sm:$0xff]
          %v420 = vld [vmem:[%s315 + $0x88] sm:$0xff]
          %v421 = vld [vmem:[%s315 + $0x90] sm:$0xff]
          %v422 = vld [vmem:[%s315 + $0x98] sm:$0xff]
          %v423 = vld [vmem:[%s315 + $0xa0] sm:$0xff]
          %v424 = vld [vmem:[%s315 + $0xa8] sm:$0xff]
          %v425 = vld [vmem:[%s315 + $0xb0] sm:$0xff]
          %v426 = vld [vmem:[%s315 + $0xb8] sm:$0xff]
          %v427 = vld [vmem:[%s315 + $0xc0] sm:$0xff]
          %v428 = vld [vmem:[%s315 + $0xc8] sm:$0xff]
          %v429 = vld [vmem:[%s315 + $0xd0] sm:$0xff]
          %v430 = vld [vmem:[%s315 + $0xd8] sm:$0xff]
          %v431 = vld [vmem:[%s315 + $0xe0] sm:$0xff]
          %v432 = vld [vmem:[%s315 + $0xe8] sm:$0xff]
          %v433 = vld [vmem:[%s315 + $0xf0] sm:$0xff]
          %v434 = vld [vmem:[%s315 + $0xf8] sm:$0xff]
          %v435 = vld [vmem:[%s333] sm:$0xf]
          %v437 = vlaneseq
          %v438 = vshrl.u32 %v437, 7
          %v439 = vsub.s32 0, %v438
          %v440 = vrot.slane %v435, %v439
          %v441 = vlaneseq
          %v442 = vshrl.u32 %v441, 7
          %v443 = vsub.s32 1, %v442
          %v444 = vrot.slane %v435, %v443
          %v445 = vlaneseq
          %v446 = vshrl.u32 %v445, 7
          %v447 = vsub.s32 2, %v446
          %v448 = vrot.slane %v435, %v447
          %v449 = vlaneseq
          %v450 = vshrl.u32 %v449, 7
          %v451 = vsub.s32 3, %v450
          %v452 = vrot.slane %v435, %v451
          %v489 = vunpack.c.l.b16 %v403
          %v490 = vunpack.c.h.b16 %v403
          %v491 = vunpack.c.l.b16 %v404
          %v492 = vunpack.c.h.b16 %v404
          %v493 = vunpack.c.l.b16 %v405
          %v494 = vunpack.c.h.b16 %v405
          %v495 = vunpack.c.l.b16 %v406
          %v496 = vunpack.c.h.b16 %v406
          %v497 = vunpack.c.l.b16 %v407
          %v498 = vunpack.c.h.b16 %v407
          %v499 = vunpack.c.l.b16 %v408
          %v500 = vunpack.c.h.b16 %v408
          %v501 = vunpack.c.l.b16 %v409
          %v502 = vunpack.c.h.b16 %v409
          %v503 = vunpack.c.l.b16 %v410
          %v504 = vunpack.c.h.b16 %v410
          %v505 = vunpack.c.l.b16 %v411
          %v506 = vunpack.c.h.b16 %v411
          %v507 = vunpack.c.l.b16 %v412
          %v508 = vunpack.c.h.b16 %v412
          %v509 = vunpack.c.l.b16 %v413
          %v510 = vunpack.c.h.b16 %v413
          %v511 = vunpack.c.l.b16 %v414
          %v512 = vunpack.c.h.b16 %v414
          %v513 = vunpack.c.l.b16 %v415
          %v514 = vunpack.c.h.b16 %v415
          %v515 = vunpack.c.l.b16 %v416
          %v516 = vunpack.c.h.b16 %v416
          %v517 = vunpack.c.l.b16 %v417
          %v518 = vunpack.c.h.b16 %v417
          %v519 = vunpack.c.l.b16 %v418
          %v520 = vunpack.c.h.b16 %v418
          %v521 = vunpack.c.l.b16 %v419
          %v522 = vunpack.c.h.b16 %v419
          %v523 = vunpack.c.l.b16 %v420
          %v524 = vunpack.c.h.b16 %v420
          %v525 = vunpack.c.l.b16 %v421
          %v526 = vunpack.c.h.b16 %v421
          %v527 = vunpack.c.l.b16 %v422
          %v528 = vunpack.c.h.b16 %v422
          %v529 = vunpack.c.l.b16 %v423
          %v530 = vunpack.c.h.b16 %v423
          %v531 = vunpack.c.l.b16 %v424
          %v532 = vunpack.c.h.b16 %v424
          %v533 = vunpack.c.l.b16 %v425
          %v534 = vunpack.c.h.b16 %v425
          %v535 = vunpack.c.l.b16 %v426
          %v536 = vunpack.c.h.b16 %v426
          %v537 = vunpack.c.l.b16 %v427
          %v538 = vunpack.c.h.b16 %v427
          %v539 = vunpack.c.l.b16 %v428
          %v540 = vunpack.c.h.b16 %v428
          %v541 = vunpack.c.l.b16 %v429
          %v542 = vunpack.c.h.b16 %v429
          %v543 = vunpack.c.l.b16 %v430
          %v544 = vunpack.c.h.b16 %v430
          %v545 = vunpack.c.l.b16 %v431
          %v546 = vunpack.c.h.b16 %v431
          %v547 = vunpack.c.l.b16 %v432
          %v548 = vunpack.c.h.b16 %v432
          %v549 = vunpack.c.l.b16 %v433
          %v550 = vunpack.c.h.b16 %v433
          %v551 = vunpack.c.l.b16 %v434
          %v552 = vunpack.c.h.b16 %v434
          %v553 = vpack.c.b16 %v493, %v489
          %v554 = vpack.c.b16 %v494, %v490
          %v555 = vpack.c.b16 %v495, %v491
          %v556 = vpack.c.b16 %v496, %v492
          %v557 = vpack.c.b16 %v501, %v497
          %v558 = vpack.c.b16 %v502, %v498
          %v559 = vpack.c.b16 %v503, %v499
          %v560 = vpack.c.b16 %v504, %v500
          %v561 = vpack.c.b16 %v509, %v505
          %v562 = vpack.c.b16 %v510, %v506
          %v563 = vpack.c.b16 %v511, %v507
          %v564 = vpack.c.b16 %v512, %v508
          %v565 = vpack.c.b16 %v517, %v513
          %v566 = vpack.c.b16 %v518, %v514
          %v567 = vpack.c.b16 %v519, %v515
          %v568 = vpack.c.b16 %v520, %v516
          %v569 = vpack.c.b16 %v525, %v521
          %v570 = vpack.c.b16 %v526, %v522
          %v571 = vpack.c.b16 %v527, %v523
          %v572 = vpack.c.b16 %v528, %v524
          %v573 = vpack.c.b16 %v533, %v529
          %v574 = vpack.c.b16 %v534, %v530
          %v575 = vpack.c.b16 %v535, %v531
          %v576 = vpack.c.b16 %v536, %v532
          %v577 = vpack.c.b16 %v541, %v537
          %v578 = vpack.c.b16 %v542, %v538
          %v579 = vpack.c.b16 %v543, %v539
          %v580 = vpack.c.b16 %v544, %v540
          %v581 = vpack.c.b16 %v549, %v545
          %v582 = vpack.c.b16 %v550, %v546
          %v583 = vpack.c.b16 %v551, %v547
          %v584 = vpack.c.b16 %v552, %v548
          %617 = vmatprep.subr.bf16.mxu0 %v554
          %618 = vmatpush1.bf16.msra.mxu0 %v553
          %619 = vmatprep.subr.bf16.mxu0 %v558
          %620 = vmatpush1.bf16.msra.mxu0 %v557
          %621 = vmatprep.subr.bf16.mxu0 %v562
          %622 = vmatpush1.bf16.msra.mxu0 %v561
          %623 = vmatprep.subr.bf16.mxu0 %v566
          %624 = vmatpush1.bf16.msra.mxu0 %v565
          %625 = vmatprep.subr.bf16.mxu0 %v570
          %626 = vmatpush1.bf16.msra.mxu0 %v569
          %627 = vmatprep.subr.bf16.mxu0 %v574
          %628 = vmatpush1.bf16.msra.mxu0 %v573
          %629 = vmatprep.subr.bf16.mxu0 %v578
          %630 = vmatpush1.bf16.msra.mxu0 %v577
          %631 = vmatprep.subr.bf16.mxu0 %v582
          %632 = vmatpush1.bf16.msra.mxu0 %v581
          %633 = vmatprep.subr.bf16.mxu0 0
          %634 = vmatpush1.bf16.msra.mxu0 0
          %635 = vmatprep.subr.bf16.mxu0 0
          %636 = vmatpush1.bf16.msra.mxu0 0
          %637 = vmatprep.subr.bf16.mxu0 0
          %638 = vmatpush1.bf16.msra.mxu0 0
          %639 = vmatprep.subr.bf16.mxu0 0
          %640 = vmatpush1.bf16.msra.mxu0 0
          %641 = vmatprep.subr.bf16.mxu0 0
          %642 = vmatpush1.bf16.msra.mxu0 0
          %643 = vmatprep.subr.bf16.mxu0 0
          %644 = vmatpush1.bf16.msra.mxu0 0
          %645 = vmatprep.subr.bf16.mxu0 0
          %646 = vmatpush1.bf16.msra.mxu0 0
          %647 = vmatprep.subr.bf16.mxu0 0
          %648 = vmatpush1.bf16.msra.mxu0 0
          %649 = vmatprep.mubr.bf16.mxu0 0
          %650 = vmatmul.mubr.bf16.gmra.mrb[0].mxu0 %v402
          %v651 = vpop.f32.mrb[0].mxu0
          %v652 = vadd.f32 %v440, %v651
          %v653 = vpop.f32.mrb[0].mxu0
          %v654 = vadd.f32 %v444, %v653
          %v655 = vpop.f32.mrb[0].mxu0
          %v656 = vadd.f32 %v440, %v655
          %v657 = vpop.f32.mrb[0].mxu0
          %v658 = vadd.f32 %v444, %v657
          %659 = vdwg.mxu0
          %660 = vmatprep.subr.bf16.mxu0 %v556
          %661 = vmatpush1.bf16.msra.mxu0 %v555
          %662 = vmatprep.subr.bf16.mxu0 %v560
          %663 = vmatpush1.bf16.msra.mxu0 %v559
          %664 = vmatprep.subr.bf16.mxu0 %v564
          %665 = vmatpush1.bf16.msra.mxu0 %v563
          %666 = vmatprep.subr.bf16.mxu0 %v568
          %667 = vmatpush1.bf16.msra.mxu0 %v567
          %668 = vmatprep.subr.bf16.mxu0 %v572
          %669 = vmatpush1.bf16.msra.mxu0 %v571
          %670 = vmatprep.subr.bf16.mxu0 %v576
          %671 = vmatpush1.bf16.msra.mxu0 %v575
          %672 = vmatprep.subr.bf16.mxu0 %v580
          %673 = vmatpush1.bf16.msra.mxu0 %v579
          %674 = vmatprep.subr.bf16.mxu0 %v584
          %675 = vmatpush1.bf16.msra.mxu0 %v583
          %676 = vmatprep.subr.bf16.mxu0 0
          %677 = vmatpush1.bf16.msra.mxu0 0
          %678 = vmatprep.subr.bf16.mxu0 0
          %679 = vmatpush1.bf16.msra.mxu0 0
          %680 = vmatprep.subr.bf16.mxu0 0
          %681 = vmatpush1.bf16.msra.mxu0 0
          %682 = vmatprep.subr.bf16.mxu0 0
          %683 = vmatpush1.bf16.msra.mxu0 0
          %684 = vmatprep.subr.bf16.mxu0 0
          %685 = vmatpush1.bf16.msra.mxu0 0
          %686 = vmatprep.subr.bf16.mxu0 0
          %687 = vmatpush1.bf16.msra.mxu0 0
          %688 = vmatprep.subr.bf16.mxu0 0
          %689 = vmatpush1.bf16.msra.mxu0 0
          %690 = vmatprep.subr.bf16.mxu0 0
          %691 = vmatpush1.bf16.msra.mxu0 0
          %692 = vmatprep.mubr.bf16.mxu0 0
          %693 = vmatmul.mubr.bf16.gmra.mrb[0].mxu0 %v402
          %v694 = vpop.f32.mrb[0].mxu0
          %v695 = vadd.f32 %v448, %v694
          %v696 = vpop.f32.mrb[0].mxu0
          %v697 = vadd.f32 %v452, %v696
          %v698 = vpop.f32.mrb[0].mxu0
          %v699 = vadd.f32 %v448, %v698
          %v700 = vpop.f32.mrb[0].mxu0
          %v701 = vadd.f32 %v452, %v700
          %702 = vdwg.mxu0
          %703 = vst [vmem:[#allocation3] sm:$0xff] %v652
          %704 = vst [vmem:[#allocation3 + $0x8] sm:$0xff] %v654
          %705 = vst [vmem:[#allocation3 + $0x10] sm:$0xff] %v695
          %706 = vst [vmem:[#allocation3 + $0x18] sm:$0xff] %v697
          %707 = vst [vmem:[#allocation3 + $0x20] sm:$0xff] %v656
          %708 = vst [vmem:[#allocation3 + $0x28] sm:$0xff] %v658
          %709 = vst [vmem:[#allocation3 + $0x30] sm:$0xff] %v699
          %710 = vst [vmem:[#allocation3 + $0x38] sm:$0xff] %v701
        $region76: #{tpu_custom_call.1} parent=43 // pred_fallthru
          _
        %v711 = vld [vmem:[%s324] sm:$0xff]
        %v712 = vld [vmem:[%s324 + $0x8] sm:$0xff]
        %v713 = vld [vmem:[%s324 + $0x10] sm:$0xff]
        %v714 = vld [vmem:[%s324 + $0x18] sm:$0xff]
        %v715 = vld [vmem:[%s324 + $0x20] sm:$0xff]
        %v716 = vld [vmem:[%s324 + $0x28] sm:$0xff]
        %v717 = vld [vmem:[%s324 + $0x30] sm:$0xff]
        %v718 = vld [vmem:[%s324 + $0x38] sm:$0xff]
        %v719 = vld [vmem:[%s324 + $0x40] sm:$0xff]
        %v720 = vld [vmem:[%s324 + $0x48] sm:$0xff]
        %v721 = vld [vmem:[%s324 + $0x50] sm:$0xff]
        %v722 = vld [vmem:[%s324 + $0x58] sm:$0xff]
        %v723 = vld [vmem:[%s324 + $0x60] sm:$0xff]
        %v724 = vld [vmem:[%s324 + $0x68] sm:$0xff]
        %v725 = vld [vmem:[%s324 + $0x70] sm:$0xff]
        %v726 = vld [vmem:[%s324 + $0x78] sm:$0xff]
        %v727 = vld [vmem:[%s324 + $0x80] sm:$0xff]
        %v728 = vld [vmem:[%s324 + $0x88] sm:$0xff]
        %v729 = vld [vmem:[%s324 + $0x90] sm:$0xff]
        %v730 = vld [vmem:[%s324 + $0x98] sm:$0xff]
        %v731 = vld [vmem:[%s324 + $0xa0] sm:$0xff]
        %v732 = vld [vmem:[%s324 + $0xa8] sm:$0xff]
        %v733 = vld [vmem:[%s324 + $0xb0] sm:$0xff]
        %v734 = vld [vmem:[%s324 + $0xb8] sm:$0xff]
        %v735 = vld [vmem:[%s324 + $0xc0] sm:$0xff]
        %v736 = vld [vmem:[%s324 + $0xc8] sm:$0xff]
        %v737 = vld [vmem:[%s324 + $0xd0] sm:$0xff]
        %v738 = vld [vmem:[%s324 + $0xd8] sm:$0xff]
        %v739 = vld [vmem:[%s324 + $0xe0] sm:$0xff]
        %v740 = vld [vmem:[%s324 + $0xe8] sm:$0xff]
        %v741 = vld [vmem:[%s324 + $0xf0] sm:$0xff]
        %v742 = vld [vmem:[%s324 + $0xf8] sm:$0xff]
        %v743 = vld [vmem:[#allocation3] sm:$0x3]
        %v744 = vld [vmem:[#allocation3 + $0x8] sm:$0x3]
        %v745 = vld [vmem:[#allocation3 + $0x10] sm:$0x3]
        %v746 = vld [vmem:[#allocation3 + $0x18] sm:$0x3]
        %v779 = vunpack.c.l.b16 %v711
        %v780 = vunpack.c.h.b16 %v711
        %v781 = vunpack.c.l.b16 %v712
        %v782 = vunpack.c.h.b16 %v712
        %v783 = vunpack.c.l.b16 %v713
        %v784 = vunpack.c.h.b16 %v713
        %v785 = vunpack.c.l.b16 %v714
        %v786 = vunpack.c.h.b16 %v714
        %v787 = vunpack.c.l.b16 %v715
        %v788 = vunpack.c.h.b16 %v715
        %v789 = vunpack.c.l.b16 %v716
        %v790 = vunpack.c.h.b16 %v716
        %v791 = vunpack.c.l.b16 %v717
        %v792 = vunpack.c.h.b16 %v717
        %v793 = vunpack.c.l.b16 %v718
        %v794 = vunpack.c.h.b16 %v718
        %v795 = vunpack.c.l.b16 %v719
        %v796 = vunpack.c.h.b16 %v719
        %v797 = vunpack.c.l.b16 %v720
        %v798 = vunpack.c.h.b16 %v720
        %v799 = vunpack.c.l.b16 %v721
        %v800 = vunpack.c.h.b16 %v721
        %v801 = vunpack.c.l.b16 %v722
        %v802 = vunpack.c.h.b16 %v722
        %v803 = vunpack.c.l.b16 %v723
        %v804 = vunpack.c.h.b16 %v723
        %v805 = vunpack.c.l.b16 %v724
        %v806 = vunpack.c.h.b16 %v724
        %v807 = vunpack.c.l.b16 %v725
        %v808 = vunpack.c.h.b16 %v725
        %v809 = vunpack.c.l.b16 %v726
        %v810 = vunpack.c.h.b16 %v726
        %v811 = vunpack.c.l.b16 %v727
        %v812 = vunpack.c.h.b16 %v727
        %v813 = vunpack.c.l.b16 %v728
        %v814 = vunpack.c.h.b16 %v728
        %v815 = vunpack.c.l.b16 %v729
        %v816 = vunpack.c.h.b16 %v729
        %v817 = vunpack.c.l.b16 %v730
        %v818 = vunpack.c.h.b16 %v730
        %v819 = vunpack.c.l.b16 %v731
        %v820 = vunpack.c.h.b16 %v731
        %v821 = vunpack.c.l.b16 %v732
        %v822 = vunpack.c.h.b16 %v732
        %v823 = vunpack.c.l.b16 %v733
        %v824 = vunpack.c.h.b16 %v733
        %v825 = vunpack.c.l.b16 %v734
        %v826 = vunpack.c.h.b16 %v734
        %v827 = vunpack.c.l.b16 %v735
        %v828 = vunpack.c.h.b16 %v735
        %v829 = vunpack.c.l.b16 %v736
        %v830 = vunpack.c.h.b16 %v736
        %v831 = vunpack.c.l.b16 %v737
        %v832 = vunpack.c.h.b16 %v737
        %v833 = vunpack.c.l.b16 %v738
        %v834 = vunpack.c.h.b16 %v738
        %v835 = vunpack.c.l.b16 %v739
        %v836 = vunpack.c.h.b16 %v739
        %v837 = vunpack.c.l.b16 %v740
        %v838 = vunpack.c.h.b16 %v740
        %v839 = vunpack.c.l.b16 %v741
        %v840 = vunpack.c.h.b16 %v741
        %v841 = vunpack.c.l.b16 %v742
        %v842 = vunpack.c.h.b16 %v742
        %v843 = vpack.c.b16 %v783, %v779
        %v844 = vpack.c.b16 %v784, %v780
        %v845 = vpack.c.b16 %v785, %v781
        %v846 = vpack.c.b16 %v786, %v782
        %v847 = vpack.c.b16 %v791, %v787
        %v848 = vpack.c.b16 %v792, %v788
        %v849 = vpack.c.b16 %v793, %v789
        %v850 = vpack.c.b16 %v794, %v790
        %v851 = vpack.c.b16 %v799, %v795
        %v852 = vpack.c.b16 %v800, %v796
        %v853 = vpack.c.b16 %v801, %v797
        %v854 = vpack.c.b16 %v802, %v798
        %v855 = vpack.c.b16 %v807, %v803
        %v856 = vpack.c.b16 %v808, %v804
        %v857 = vpack.c.b16 %v809, %v805
        %v858 = vpack.c.b16 %v810, %v806
        %v859 = vpack.c.b16 %v815, %v811
        %v860 = vpack.c.b16 %v816, %v812
        %v861 = vpack.c.b16 %v817, %v813
        %v862 = vpack.c.b16 %v818, %v814
        %v863 = vpack.c.b16 %v823, %v819
        %v864 = vpack.c.b16 %v824, %v820
        %v865 = vpack.c.b16 %v825, %v821
        %v866 = vpack.c.b16 %v826, %v822
        %v867 = vpack.c.b16 %v831, %v827
        %v868 = vpack.c.b16 %v832, %v828
        %v869 = vpack.c.b16 %v833, %v829
        %v870 = vpack.c.b16 %v834, %v830
        %v871 = vpack.c.b16 %v839, %v835
        %v872 = vpack.c.b16 %v840, %v836
        %v873 = vpack.c.b16 %v841, %v837
        %v874 = vpack.c.b16 %v842, %v838
        %907 = vmatprep.subr.bf16.mxu0 %v844
        %908 = vmatpush1.bf16.msra.mxu0 %v843
        %909 = vmatprep.subr.bf16.mxu0 %v848
        %910 = vmatpush1.bf16.msra.mxu0 %v847
        %911 = vmatprep.subr.bf16.mxu0 %v852
        %912 = vmatpush1.bf16.msra.mxu0 %v851
        %913 = vmatprep.subr.bf16.mxu0 %v856
        %914 = vmatpush1.bf16.msra.mxu0 %v855
        %915 = vmatprep.subr.bf16.mxu0 %v860
        %916 = vmatpush1.bf16.msra.mxu0 %v859
        %917 = vmatprep.subr.bf16.mxu0 %v864
        %918 = vmatpush1.bf16.msra.mxu0 %v863
        %919 = vmatprep.subr.bf16.mxu0 %v868
        %920 = vmatpush1.bf16.msra.mxu0 %v867
        %921 = vmatprep.subr.bf16.mxu0 %v872
        %922 = vmatpush1.bf16.msra.mxu0 %v871
        %923 = vmatprep.subr.bf16.mxu0 0
        %924 = vmatpush1.bf16.msra.mxu0 0
        %925 = vmatprep.subr.bf16.mxu0 0
        %926 = vmatpush1.bf16.msra.mxu0 0
        %927 = vmatprep.subr.bf16.mxu0 0
        %928 = vmatpush1.bf16.msra.mxu0 0
        %929 = vmatprep.subr.bf16.mxu0 0
        %930 = vmatpush1.bf16.msra.mxu0 0
        %931 = vmatprep.subr.bf16.mxu0 0
        %932 = vmatpush1.bf16.msra.mxu0 0
        %933 = vmatprep.subr.bf16.mxu0 0
        %934 = vmatpush1.bf16.msra.mxu0 0
        %935 = vmatprep.subr.bf16.mxu0 0
        %936 = vmatpush1.bf16.msra.mxu0 0
        %937 = vmatprep.subr.bf16.mxu0 0
        %938 = vmatpush1.bf16.msra.mxu0 0
        %939 = vmatprep.mubr.bf16.mxu0 0
        %940 = vmatmul.mubr.bf16.gmra.mrb[0].mxu0 0
        %v941 = vpop.f32.mrb[0].mxu0
        %v942 = vadd.f32 0.0, %v941
        %v943 = vpop.f32.mrb[0].mxu0
        %v944 = vadd.f32 0.0, %v943
        %v945 = vpop.f32.mrb[0].mxu0
        %v946 = vpop.f32.mrb[0].mxu0
        %947 = vdwg.mxu0
        %948 = vmatprep.subr.bf16.mxu0 %v846
        %949 = vmatpush1.bf16.msra.mxu0 %v845
        %950 = vmatprep.subr.bf16.mxu0 %v850
        %951 = vmatpush1.bf16.msra.mxu0 %v849
        %952 = vmatprep.subr.bf16.mxu0 %v854
        %953 = vmatpush1.bf16.msra.mxu0 %v853
        %954 = vmatprep.subr.bf16.mxu0 %v858
        %955 = vmatpush1.bf16.msra.mxu0 %v857
        %956 = vmatprep.subr.bf16.mxu0 %v862
        %957 = vmatpush1.bf16.msra.mxu0 %v861
        %958 = vmatprep.subr.bf16.mxu0 %v866
        %959 = vmatpush1.bf16.msra.mxu0 %v865
        %960 = vmatprep.subr.bf16.mxu0 %v870
        %961 = vmatpush1.bf16.msra.mxu0 %v869
        %962 = vmatprep.subr.bf16.mxu0 %v874
        %963 = vmatpush1.bf16.msra.mxu0 %v873
        %964 = vmatprep.subr.bf16.mxu0 0
        %965 = vmatpush1.bf16.msra.mxu0 0
        %966 = vmatprep.subr.bf16.mxu0 0
        %967 = vmatpush1.bf16.msra.mxu0 0
        %968 = vmatprep.subr.bf16.mxu0 0
        %969 = vmatpush1.bf16.msra.mxu0 0
        %970 = vmatprep.subr.bf16.mxu0 0
        %971 = vmatpush1.bf16.msra.mxu0 0
        %972 = vmatprep.subr.bf16.mxu0 0
        %973 = vmatpush1.bf16.msra.mxu0 0
        %974 = vmatprep.subr.bf16.mxu0 0
        %975 = vmatpush1.bf16.msra.mxu0 0
        %976 = vmatprep.subr.bf16.mxu0 0
        %977 = vmatpush1.bf16.msra.mxu0 0
        %978 = vmatprep.subr.bf16.mxu0 0
        %979 = vmatpush1.bf16.msra.mxu0 0
        %980 = vmatprep.mubr.bf16.mxu0 0
        %981 = vmatmul.mubr.bf16.gmra.mrb[0].mxu0 0
        %v982 = vpop.f32.mrb[0].mxu0
        %v983 = vadd.f32 0.0, %v982
        %v984 = vpop.f32.mrb[0].mxu0
        %v985 = vadd.f32 0.0, %v984
        %v986 = vpop.f32.mrb[0].mxu0
        %v987 = vpop.f32.mrb[0].mxu0
        %988 = vdwg.mxu0
        %v989 = vadd.f32 %v743, %v942
        %v990 = vadd.f32 %v744, %v944
        %v991 = vadd.f32 %v745, %v983
        %v992 = vadd.f32 %v746, %v985
        %v993 = vxor.u32 %v989, 2147483648
        %v994 = vmul.f32 %v993, 1.442695
        %v995 = vpow.pop %v994
        %v996 = vadd.f32 %v995, 1.0
        %v997 = vrcp.pop %v996
        %v998 = vmul.f32 1.0, %v997
        %v999 = vxor.u32 %v990, 2147483648
        %v1000 = vmul.f32 %v999, 1.442695
        %v1001 = vpow.pop %v1000
        %v1002 = vadd.f32 %v1001, 1.0
        %v1003 = vrcp.pop %v1002
        %v1004 = vmul.f32 1.0, %v1003
        %v1005 = vtanh.pop %v991
        %v1006 = vxor.u32 %v992, 2147483648
        %v1007 = vmul.f32 %v1006, 1.442695
        %v1008 = vpow.pop %v1007
        %v1009 = vadd.f32 %v1008, 1.0
        %v1010 = vrcp.pop %v1009
        %v1011 = vmul.f32 1.0, %v1010
        %v1012 = vmul.f32 %v1004, 0.0
        %v1013 = vmul.f32 %v998, %v1005
        %v1014 = vadd.f32 %v1012, %v1013
        %v1015 = vtanh.pop %v1014
        %v1016 = vmul.f32 %v1011, %v1015
        %1017 = vst [vmem:[#allocation2] sm:$0x3] %v1016
        %v1018 = vld [vmem:[#allocation3] sm:$0xc]
        %v1019 = vld [vmem:[#allocation3 + $0x8] sm:$0xc]
        %v1020 = vld [vmem:[#allocation3 + $0x10] sm:$0xc]
        %v1021 = vld [vmem:[#allocation3 + $0x18] sm:$0xc]
        %v1022 = vpack.c.bf16 %v1016, %v1016
        %1023 = vmatprep.subr.bf16.mxu0 %v844
        %1024 = vmatpush1.bf16.msra.mxu0 %v843
        %1025 = vmatprep.subr.bf16.mxu0 %v848
        %1026 = vmatpush1.bf16.msra.mxu0 %v847
        %1027 = vmatprep.subr.bf16.mxu0 %v852
        %1028 = vmatpush1.bf16.msra.mxu0 %v851
        %1029 = vmatprep.subr.bf16.mxu0 %v856
        %1030 = vmatpush1.bf16.msra.mxu0 %v855
        %1031 = vmatprep.subr.bf16.mxu0 %v860
        %1032 = vmatpush1.bf16.msra.mxu0 %v859
        %1033 = vmatprep.subr.bf16.mxu0 %v864
        %1034 = vmatpush1.bf16.msra.mxu0 %v863
        %1035 = vmatprep.subr.bf16.mxu0 %v868
        %1036 = vmatpush1.bf16.msra.mxu0 %v867
        %1037 = vmatprep.subr.bf16.mxu0 %v872
        %1038 = vmatpush1.bf16.msra.mxu0 %v871
        %1039 = vmatprep.subr.bf16.mxu0 0
        %1040 = vmatpush1.bf16.msra.mxu0 0
        %1041 = vmatprep.subr.bf16.mxu0 0
        %1042 = vmatpush1.bf16.msra.mxu0 0
        %1043 = vmatprep.subr.bf16.mxu0 0
        %1044 = vmatpush1.bf16.msra.mxu0 0
        %1045 = vmatprep.subr.bf16.mxu0 0
        %1046 = vmatpush1.bf16.msra.mxu0 0
        %1047 = vmatprep.subr.bf16.mxu0 0
        %1048 = vmatpush1.bf16.msra.mxu0 0
        %1049 = vmatprep.subr.bf16.mxu0 0
        %1050 = vmatpush1.bf16.msra.mxu0 0
        %1051 = vmatprep.subr.bf16.mxu0 0
        %1052 = vmatpush1.bf16.msra.mxu0 0
        %1053 = vmatprep.subr.bf16.mxu0 0
        %1054 = vmatpush1.bf16.msra.mxu0 0
        %1055 = vmatprep.mubr.bf16.mxu0 0
        %1056 = vmatmul.mubr.bf16.gmra.mrb[0].mxu0 %v1022
        %v1057 = vpop.f32.mrb[0].mxu0
        %v1058 = vadd.f32 0.0, %v1057
        %v1059 = vpop.f32.mrb[0].mxu0
        %v1060 = vadd.f32 0.0, %v1059
        %v1061 = vpop.f32.mrb[0].mxu0
        %v1062 = vpop.f32.mrb[0].mxu0
        %1063 = vdwg.mxu0
        %1064 = vmatprep.subr.bf16.mxu0 %v846
        %1065 = vmatpush1.bf16.msra.mxu0 %v845
        %1066 = vmatprep.subr.bf16.mxu0 %v850
        %1067 = vmatpush1.bf16.msra.mxu0 %v849
        %1068 = vmatprep.subr.bf16.mxu0 %v854
        %1069 = vmatpush1.bf16.msra.mxu0 %v853
        %1070 = vmatprep.subr.bf16.mxu0 %v858
        %1071 = vmatpush1.bf16.msra.mxu0 %v857
        %1072 = vmatprep.subr.bf16.mxu0 %v862
        %1073 = vmatpush1.bf16.msra.mxu0 %v861
        %1074 = vmatprep.subr.bf16.mxu0 %v866
        %1075 = vmatpush1.bf16.msra.mxu0 %v865
        %1076 = vmatprep.subr.bf16.mxu0 %v870
        %1077 = vmatpush1.bf16.msra.mxu0 %v869
        %1078 = vmatprep.subr.bf16.mxu0 %v874
        %1079 = vmatpush1.bf16.msra.mxu0 %v873
        %1080 = vmatprep.subr.bf16.mxu0 0
        %1081 = vmatpush1.bf16.msra.mxu0 0
        %1082 = vmatprep.subr.bf16.mxu0 0
        %1083 = vmatpush1.bf16.msra.mxu0 0
        %1084 = vmatprep.subr.bf16.mxu0 0
        %1085 = vmatpush1.bf16.msra.mxu0 0
        %1086 = vmatprep.subr.bf16.mxu0 0
        %1087 = vmatpush1.bf16.msra.mxu0 0
        %1088 = vmatprep.subr.bf16.mxu0 0
        %1089 = vmatpush1.bf16.msra.mxu0 0
        %1090 = vmatprep.subr.bf16.mxu0 0
        %1091 = vmatpush1.bf16.msra.mxu0 0
        %1092 = vmatprep.subr.bf16.mxu0 0
        %1093 = vmatpush1.bf16.msra.mxu0 0
        %1094 = vmatprep.subr.bf16.mxu0 0
        %1095 = vmatpush1.bf16.msra.mxu0 0
        %1096 = vmatprep.mubr.bf16.mxu0 0
        %1097 = vmatmul.mubr.bf16.gmra.mrb[0].mxu0 %v1022
        %v1098 = vpop.f32.mrb[0].mxu0
        %v1099 = vadd.f32 0.0, %v1098
        %v1100 = vpop.f32.mrb[0].mxu0
        %v1101 = vadd.f32 0.0, %v1100
        %v1102 = vpop.f32.mrb[0].mxu0
        %v1103 = vpop.f32.mrb[0].mxu0
        %1104 = vdwg.mxu0
        %v1109 = vrot.slane %v1058, 6
        %v1110 = vrot.slane %v1060, 6
        %v1111 = vrot.slane %v1099, 6
        %v1112 = vrot.slane %v1101, 6
        %v1117 = vadd.f32 %v1018, %v1109
        %v1118 = vadd.f32 %v1019, %v1110
        %v1119 = vadd.f32 %v1020, %v1111
        %v1120 = vadd.f32 %v1021, %v1112
        %v1121 = vxor.u32 %v1117, 2147483648
        %v1122 = vmul.f32 %v1121, 1.442695
        %v1123 = vpow.pop %v1122
        %v1124 = vadd.f32 %v1123, 1.0
        %v1125 = vrcp.pop %v1124
        %v1126 = vmul.f32 1.0, %v1125
        %v1127 = vxor.u32 %v1118, 2147483648
        %v1128 = vmul.f32 %v1127, 1.442695
        %v1129 = vpow.pop %v1128
        %v1130 = vadd.f32 %v1129, 1.0
        %v1131 = vrcp.pop %v1130
        %v1132 = vmul.f32 1.0, %v1131
        %v1133 = vtanh.pop %v1119
        %v1134 = vxor.u32 %v1120, 2147483648
        %v1135 = vmul.f32 %v1134, 1.442695
        %v1136 = vpow.pop %v1135
        %v1137 = vadd.f32 %v1136, 1.0
        %v1138 = vrcp.pop %v1137
        %v1139 = vmul.f32 1.0, %v1138
        %v1141 = vrot.slane %v1014, 6
        %v1143 = vmul.f32 %v1132, %v1141
        %v1144 = vmul.f32 %v1126, %v1133
        %v1145 = vadd.f32 %v1143, %v1144
        %v1146 = vtanh.pop %v1145
        %v1147 = vmul.f32 %v1139, %v1146
        %1148 = vst [vmem:[#allocation2] sm:$0xc] %v1147
        %v1149 = vld [vmem:[#allocation3] sm:$0x30]
        %v1150 = vld [vmem:[#allocation3 + $0x8] sm:$0x30]
        %v1151 = vld [vmem:[#allocation3 + $0x10] sm:$0x30]
        %v1152 = vld [vmem:[#allocation3 + $0x18] sm:$0x30]
        %v1153 = vpack.c.bf16 %v1147, %v1147
        %v1155 = vrot.slane %v1153, 1
        %1157 = vmatprep.subr.bf16.mxu0 %v844
        %1158 = vmatpush1.bf16.msra.mxu0 %v843
        %1159 = vmatprep.subr.bf16.mxu0 %v848
        %1160 = vmatpush1.bf16.msra.mxu0 %v847
        %1161 = vmatprep.subr.bf16.mxu0 %v852
        %1162 = vmatpush1.bf16.msra.mxu0 %v851
        %1163 = vmatprep.subr.bf16.mxu0 %v856
        %1164 = vmatpush1.bf16.msra.mxu0 %v855
        %1165 = vmatprep.subr.bf16.mxu0 %v860
        %1166 = vmatpush1.bf16.msra.mxu0 %v859
        %1167 = vmatprep.subr.bf16.mxu0 %v864
        %1168 = vmatpush1.bf16.msra.mxu0 %v863
        %1169 = vmatprep.subr.bf16.mxu0 %v868
        %1170 = vmatpush1.bf16.msra.mxu0 %v867
        %1171 = vmatprep.subr.bf16.mxu0 %v872
        %1172 = vmatpush1.bf16.msra.mxu0 %v871
        %1173 = vmatprep.subr.bf16.mxu0 0
        %1174 = vmatpush1.bf16.msra.mxu0 0
        %1175 = vmatprep.subr.bf16.mxu0 0
        %1176 = vmatpush1.bf16.msra.mxu0 0
        %1177 = vmatprep.subr.bf16.mxu0 0
        %1178 = vmatpush1.bf16.msra.mxu0 0
        %1179 = vmatprep.subr.bf16.mxu0 0
        %1180 = vmatpush1.bf16.msra.mxu0 0
        %1181 = vmatprep.subr.bf16.mxu0 0
        %1182 = vmatpush1.bf16.msra.mxu0 0
        %1183 = vmatprep.subr.bf16.mxu0 0
        %1184 = vmatpush1.bf16.msra.mxu0 0
        %1185 = vmatprep.subr.bf16.mxu0 0
        %1186 = vmatpush1.bf16.msra.mxu0 0
        %1187 = vmatprep.subr.bf16.mxu0 0
        %1188 = vmatpush1.bf16.msra.mxu0 0
        %1189 = vmatprep.mubr.bf16.mxu0 0
        %1190 = vmatmul.mubr.bf16.gmra.mrb[0].mxu0 %v1155
        %v1191 = vpop.f32.mrb[0].mxu0
        %v1192 = vadd.f32 0.0, %v1191
        %v1193 = vpop.f32.mrb[0].mxu0
        %v1194 = vadd.f32 0.0, %v1193
        %v1195 = vpop.f32.mrb[0].mxu0
        %v1196 = vpop.f32.mrb[0].mxu0
        %1197 = vdwg.mxu0
        %1198 = vmatprep.subr.bf16.mxu0 %v846
        %1199 = vmatpush1.bf16.msra.mxu0 %v845
        %1200 = vmatprep.subr.bf16.mxu0 %v850
        %1201 = vmatpush1.bf16.msra.mxu0 %v849
        %1202 = vmatprep.subr.bf16.mxu0 %v854
        %1203 = vmatpush1.bf16.msra.mxu0 %v853
        %1204 = vmatprep.subr.bf16.mxu0 %v858
        %1205 = vmatpush1.bf16.msra.mxu0 %v857
        %1206 = vmatprep.subr.bf16.mxu0 %v862
        %1207 = vmatpush1.bf16.msra.mxu0 %v861
        %1208 = vmatprep.subr.bf16.mxu0 %v866
        %1209 = vmatpush1.bf16.msra.mxu0 %v865
        %1210 = vmatprep.subr.bf16.mxu0 %v870
        %1211 = vmatpush1.bf16.msra.mxu0 %v869
        %1212 = vmatprep.subr.bf16.mxu0 %v874
        %1213 = vmatpush1.bf16.msra.mxu0 %v873
        %1214 = vmatprep.subr.bf16.mxu0 0
        %1215 = vmatpush1.bf16.msra.mxu0 0
        %1216 = vmatprep.subr.bf16.mxu0 0
        %1217 = vmatpush1.bf16.msra.mxu0 0
        %1218 = vmatprep.subr.bf16.mxu0 0
        %1219 = vmatpush1.bf16.msra.mxu0 0
        %1220 = vmatprep.subr.bf16.mxu0 0
        %1221 = vmatpush1.bf16.msra.mxu0 0
        %1222 = vmatprep.subr.bf16.mxu0 0
        %1223 = vmatpush1.bf16.msra.mxu0 0
        %1224 = vmatprep.subr.bf16.mxu0 0
        %1225 = vmatpush1.bf16.msra.mxu0 0
        %1226 = vmatprep.subr.bf16.mxu0 0
        %1227 = vmatpush1.bf16.msra.mxu0 0
        %1228 = vmatprep.subr.bf16.mxu0 0
        %1229 = vmatpush1.bf16.msra.mxu0 0
        %1230 = vmatprep.mubr.bf16.mxu0 0
        %1231 = vmatmul.mubr.bf16.gmra.mrb[0].mxu0 %v1155
        %v1232 = vpop.f32.mrb[0].mxu0
        %v1233 = vadd.f32 0.0, %v1232
        %v1234 = vpop.f32.mrb[0].mxu0
        %v1235 = vadd.f32 0.0, %v1234
        %v1236 = vpop.f32.mrb[0].mxu0
        %v1237 = vpop.f32.mrb[0].mxu0
        %1238 = vdwg.mxu0
        %v1243 = vrot.slane %v1192, 4
        %v1244 = vrot.slane %v1194, 4
        %v1245 = vrot.slane %v1233, 4
        %v1246 = vrot.slane %v1235, 4
        %v1251 = vadd.f32 %v1149, %v1243
        %v1252 = vadd.f32 %v1150, %v1244
        %v1253 = vadd.f32 %v1151, %v1245
        %v1254 = vadd.f32 %v1152, %v1246
        %v1255 = vxor.u32 %v1251, 2147483648
        %v1256 = vmul.f32 %v1255, 1.442695
        %v1257 = vpow.pop %v1256
        %v1258 = vadd.f32 %v1257, 1.0
        %v1259 = vrcp.pop %v1258
        %v1260 = vmul.f32 1.0, %v1259
        %v1261 = vxor.u32 %v1252, 2147483648
        %v1262 = vmul.f32 %v1261, 1.442695
        %v1263 = vpow.pop %v1262
        %v1264 = vadd.f32 %v1263, 1.0
        %v1265 = vrcp.pop %v1264
        %v1266 = vmul.f32 1.0, %v1265
        %v1267 = vtanh.pop %v1253
        %v1268 = vxor.u32 %v1254, 2147483648
        %v1269 = vmul.f32 %v1268, 1.442695
        %v1270 = vpow.pop %v1269
        %v1271 = vadd.f32 %v1270, 1.0
        %v1272 = vrcp.pop %v1271
        %v1273 = vmul.f32 1.0, %v1272
        %v1275 = vrot.slane %v1145, 6
        %v1277 = vmul.f32 %v1266, %v1275
        %v1278 = vmul.f32 %v1260, %v1267
        %v1279 = vadd.f32 %v1277, %v1278
        %v1280 = vtanh.pop %v1279
        %v1281 = vmul.f32 %v1273, %v1280
        %1282 = vst [vmem:[#allocation2] sm:$0x30] %v1281
        %v1283 = vld [vmem:[#allocation3] sm:$0xc0]
        %v1284 = vld [vmem:[#allocation3 + $0x8] sm:$0xc0]
        %v1285 = vld [vmem:[#allocation3 + $0x10] sm:$0xc0]
        %v1286 = vld [vmem:[#allocation3 + $0x18] sm:$0xc0]
        %v1287 = vpack.c.bf16 %v1281, %v1281
        %v1289 = vrot.slane %v1287, 2
        %1291 = vmatprep.subr.bf16.mxu0 %v844
        %1292 = vmatpush1.bf16.msra.mxu0 %v843
        %1293 = vmatprep.subr.bf16.mxu0 %v848
        %1294 = vmatpush1.bf16.msra.mxu0 %v847
        %1295 = vmatprep.subr.bf16.mxu0 %v852
        %1296 = vmatpush1.bf16.msra.mxu0 %v851
        %1297 = vmatprep.subr.bf16.mxu0 %v856
        %1298 = vmatpush1.bf16.msra.mxu0 %v855
        %1299 = vmatprep.subr.bf16.mxu0 %v860
        %1300 = vmatpush1.bf16.msra.mxu0 %v859
        %1301 = vmatprep.subr.bf16.mxu0 %v864
        %1302 = vmatpush1.bf16.msra.mxu0 %v863
        %1303 = vmatprep.subr.bf16.mxu0 %v868
        %1304 = vmatpush1.bf16.msra.mxu0 %v867
        %1305 = vmatprep.subr.bf16.mxu0 %v872
        %1306 = vmatpush1.bf16.msra.mxu0 %v871
        %1307 = vmatprep.subr.bf16.mxu0 0
        %1308 = vmatpush1.bf16.msra.mxu0 0
        %1309 = vmatprep.subr.bf16.mxu0 0
        %1310 = vmatpush1.bf16.msra.mxu0 0
        %1311 = vmatprep.subr.bf16.mxu0 0
        %1312 = vmatpush1.bf16.msra.mxu0 0
        %1313 = vmatprep.subr.bf16.mxu0 0
        %1314 = vmatpush1.bf16.msra.mxu0 0
        %1315 = vmatprep.subr.bf16.mxu0 0
        %1316 = vmatpush1.bf16.msra.mxu0 0
        %1317 = vmatprep.subr.bf16.mxu0 0
        %1318 = vmatpush1.bf16.msra.mxu0 0
        %1319 = vmatprep.subr.bf16.mxu0 0
        %1320 = vmatpush1.bf16.msra.mxu0 0
        %1321 = vmatprep.subr.bf16.mxu0 0
        %1322 = vmatpush1.bf16.msra.mxu0 0
        %1323 = vmatprep.mubr.bf16.mxu0 0
        %1324 = vmatmul.mubr.bf16.gmra.mrb[0].mxu0 %v1289
        %v1325 = vpop.f32.mrb[0].mxu0
        %v1326 = vadd.f32 0.0, %v1325
        %v1327 = vpop.f32.mrb[0].mxu0
        %v1328 = vadd.f32 0.0, %v1327
        %v1329 = vpop.f32.mrb[0].mxu0
        %v1330 = vpop.f32.mrb[0].mxu0
        %1331 = vdwg.mxu0
        %1332 = vmatprep.subr.bf16.mxu0 %v846
        %1333 = vmatpush1.bf16.msra.mxu0 %v845
        %1334 = vmatprep.subr.bf16.mxu0 %v850
        %1335 = vmatpush1.bf16.msra.mxu0 %v849
        %1336 = vmatprep.subr.bf16.mxu0 %v854
        %1337 = vmatpush1.bf16.msra.mxu0 %v853
        %1338 = vmatprep.subr.bf16.mxu0 %v858
        %1339 = vmatpush1.bf16.msra.mxu0 %v857
        %1340 = vmatprep.subr.bf16.mxu0 %v862
        %1341 = vmatpush1.bf16.msra.mxu0 %v861
        %1342 = vmatprep.subr.bf16.mxu0 %v866
        %1343 = vmatpush1.bf16.msra.mxu0 %v865
        %1344 = vmatprep.subr.bf16.mxu0 %v870
        %1345 = vmatpush1.bf16.msra.mxu0 %v869
        %1346 = vmatprep.subr.bf16.mxu0 %v874
        %1347 = vmatpush1.bf16.msra.mxu0 %v873
        %1348 = vmatprep.subr.bf16.mxu0 0
        %1349 = vmatpush1.bf16.msra.mxu0 0
        %1350 = vmatprep.subr.bf16.mxu0 0
        %1351 = vmatpush1.bf16.msra.mxu0 0
        %1352 = vmatprep.subr.bf16.mxu0 0
        %1353 = vmatpush1.bf16.msra.mxu0 0
        %1354 = vmatprep.subr.bf16.mxu0 0
        %1355 = vmatpush1.bf16.msra.mxu0 0
        %1356 = vmatprep.subr.bf16.mxu0 0
        %1357 = vmatpush1.bf16.msra.mxu0 0
        %1358 = vmatprep.subr.bf16.mxu0 0
        %1359 = vmatpush1.bf16.msra.mxu0 0
        %1360 = vmatprep.subr.bf16.mxu0 0
        %1361 = vmatpush1.bf16.msra.mxu0 0
        %1362 = vmatprep.subr.bf16.mxu0 0
        %1363 = vmatpush1.bf16.msra.mxu0 0
        %1364 = vmatprep.mubr.bf16.mxu0 0
        %1365 = vmatmul.mubr.bf16.gmra.mrb[0].mxu0 %v1289
        %v1366 = vpop.f32.mrb[0].mxu0
        %v1367 = vadd.f32 0.0, %v1366
        %v1368 = vpop.f32.mrb[0].mxu0
        %v1369 = vadd.f32 0.0, %v1368
        %v1370 = vpop.f32.mrb[0].mxu0
        %v1371 = vpop.f32.mrb[0].mxu0
        %1372 = vdwg.mxu0
        %v1377 = vrot.slane %v1326, 2
        %v1378 = vrot.slane %v1328, 2
        %v1379 = vrot.slane %v1367, 2
        %v1380 = vrot.slane %v1369, 2
        %v1385 = vadd.f32 %v1283, %v1377
        %v1386 = vadd.f32 %v1284, %v1378
        %v1387 = vadd.f32 %v1285, %v1379
        %v1388 = vadd.f32 %v1286, %v1380
        %v1389 = vxor.u32 %v1385, 2147483648
        %v1390 = vmul.f32 %v1389, 1.442695
        %v1391 = vpow.pop %v1390
        %v1392 = vadd.f32 %v1391, 1.0
        %v1393 = vrcp.pop %v1392
        %v1394 = vmul.f32 1.0, %v1393
        %v1395 = vxor.u32 %v1386, 2147483648
        %v1396 = vmul.f32 %v1395, 1.442695
        %v1397 = vpow.pop %v1396
        %v1398 = vadd.f32 %v1397, 1.0
        %v1399 = vrcp.pop %v1398
        %v1400 = vmul.f32 1.0, %v1399
        %v1401 = vtanh.pop %v1387
        %v1402 = vxor.u32 %v1388, 2147483648
        %v1403 = vmul.f32 %v1402, 1.442695
        %v1404 = vpow.pop %v1403
        %v1405 = vadd.f32 %v1404, 1.0
        %v1406 = vrcp.pop %v1405
        %v1407 = vmul.f32 1.0, %v1406
        %v1409 = vrot.slane %v1279, 6
        %v1411 = vmul.f32 %v1400, %v1409
        %v1412 = vmul.f32 %v1394, %v1401
        %v1413 = vadd.f32 %v1411, %v1412
        %v1414 = vtanh.pop %v1413
        %v1415 = vmul.f32 %v1407, %v1414
        %1416 = vst [vmem:[#allocation2] sm:$0xc0] %v1415
        %v1417 = vld [vmem:[#allocation3 + $0x20] sm:$0x3]
        %v1418 = vld [vmem:[#allocation3 + $0x28] sm:$0x3]
        %v1419 = vld [vmem:[#allocation3 + $0x30] sm:$0x3]
        %v1420 = vld [vmem:[#allocation3 + $0x38] sm:$0x3]
        %v1421 = vpack.c.bf16 %v1415, %v1415
        %v1423 = vrot.slane %v1421, 3
        %1425 = vmatprep.subr.bf16.mxu0 %v844
        %1426 = vmatpush1.bf16.msra.mxu0 %v843
        %1427 = vmatprep.subr.bf16.mxu0 %v848
        %1428 = vmatpush1.bf16.msra.mxu0 %v847
        %1429 = vmatprep.subr.bf16.mxu0 %v852
        %1430 = vmatpush1.bf16.msra.mxu0 %v851
        %1431 = vmatprep.subr.bf16.mxu0 %v856
        %1432 = vmatpush1.bf16.msra.mxu0 %v855
        %1433 = vmatprep.subr.bf16.mxu0 %v860
        %1434 = vmatpush1.bf16.msra.mxu0 %v859
        %1435 = vmatprep.subr.bf16.mxu0 %v864
        %1436 = vmatpush1.bf16.msra.mxu0 %v863
        %1437 = vmatprep.subr.bf16.mxu0 %v868
        %1438 = vmatpush1.bf16.msra.mxu0 %v867
        %1439 = vmatprep.subr.bf16.mxu0 %v872
        %1440 = vmatpush1.bf16.msra.mxu0 %v871
        %1441 = vmatprep.subr.bf16.mxu0 0
        %1442 = vmatpush1.bf16.msra.mxu0 0
        %1443 = vmatprep.subr.bf16.mxu0 0
        %1444 = vmatpush1.bf16.msra.mxu0 0
        %1445 = vmatprep.subr.bf16.mxu0 0
        %1446 = vmatpush1.bf16.msra.mxu0 0
        %1447 = vmatprep.subr.bf16.mxu0 0
        %1448 = vmatpush1.bf16.msra.mxu0 0
        %1449 = vmatprep.subr.bf16.mxu0 0
        %1450 = vmatpush1.bf16.msra.mxu0 0
        %1451 = vmatprep.subr.bf16.mxu0 0
        %1452 = vmatpush1.bf16.msra.mxu0 0
        %1453 = vmatprep.subr.bf16.mxu0 0
        %1454 = vmatpush1.bf16.msra.mxu0 0
        %1455 = vmatprep.subr.bf16.mxu0 0
        %1456 = vmatpush1.bf16.msra.mxu0 0
        %1457 = vmatprep.mubr.bf16.mxu0 0
        %1458 = vmatmul.mubr.bf16.gmra.mrb[0].mxu0 %v1423
        %v1459 = vpop.f32.mrb[0].mxu0
        %v1460 = vadd.f32 0.0, %v1459
        %v1461 = vpop.f32.mrb[0].mxu0
        %v1462 = vadd.f32 0.0, %v1461
        %v1463 = vpop.f32.mrb[0].mxu0
        %v1464 = vpop.f32.mrb[0].mxu0
        %1465 = vdwg.mxu0
        %1466 = vmatprep.subr.bf16.mxu0 %v846
        %1467 = vmatpush1.bf16.msra.mxu0 %v845
        %1468 = vmatprep.subr.bf16.mxu0 %v850
        %1469 = vmatpush1.bf16.msra.mxu0 %v849
        %1470 = vmatprep.subr.bf16.mxu0 %v854
        %1471 = vmatpush1.bf16.msra.mxu0 %v853
        %1472 = vmatprep.subr.bf16.mxu0 %v858
        %1473 = vmatpush1.bf16.msra.mxu0 %v857
        %1474 = vmatprep.subr.bf16.mxu0 %v862
        %1475 = vmatpush1.bf16.msra.mxu0 %v861
        %1476 = vmatprep.subr.bf16.mxu0 %v866
        %1477 = vmatpush1.bf16.msra.mxu0 %v865
        %1478 = vmatprep.subr.bf16.mxu0 %v870
        %1479 = vmatpush1.bf16.msra.mxu0 %v869
        %1480 = vmatprep.subr.bf16.mxu0 %v874
        %1481 = vmatpush1.bf16.msra.mxu0 %v873
        %1482 = vmatprep.subr.bf16.mxu0 0
        %1483 = vmatpush1.bf16.msra.mxu0 0
        %1484 = vmatprep.subr.bf16.mxu0 0
        %1485 = vmatpush1.bf16.msra.mxu0 0
        %1486 = vmatprep.subr.bf16.mxu0 0
        %1487 = vmatpush1.bf16.msra.mxu0 0
        %1488 = vmatprep.subr.bf16.mxu0 0
        %1489 = vmatpush1.bf16.msra.mxu0 0
        %1490 = vmatprep.subr.bf16.mxu0 0
        %1491 = vmatpush1.bf16.msra.mxu0 0
        %1492 = vmatprep.subr.bf16.mxu0 0
        %1493 = vmatpush1.bf16.msra.mxu0 0
        %1494 = vmatprep.subr.bf16.mxu0 0
        %1495 = vmatpush1.bf16.msra.mxu0 0
        %1496 = vmatprep.subr.bf16.mxu0 0
        %1497 = vmatpush1.bf16.msra.mxu0 0
        %1498 = vmatprep.mubr.bf16.mxu0 0
        %1499 = vmatmul.mubr.bf16.gmra.mrb[0].mxu0 %v1423
        %v1500 = vpop.f32.mrb[0].mxu0
        %v1501 = vadd.f32 0.0, %v1500
        %v1502 = vpop.f32.mrb[0].mxu0
        %v1503 = vadd.f32 0.0, %v1502
        %v1504 = vpop.f32.mrb[0].mxu0
        %v1505 = vpop.f32.mrb[0].mxu0
        %1506 = vdwg.mxu0
        %v1507 = vadd.f32 %v1417, %v1460
        %v1508 = vadd.f32 %v1418, %v1462
        %v1509 = vadd.f32 %v1419, %v1501
        %v1510 = vadd.f32 %v1420, %v1503
        %v1511 = vxor.u32 %v1507, 2147483648
        %v1512 = vmul.f32 %v1511, 1.442695
        %v1513 = vpow.pop %v1512
        %v1514 = vadd.f32 %v1513, 1.0
        %v1515 = vrcp.pop %v1514
        %v1516 = vmul.f32 1.0, %v1515
        %v1517 = vxor.u32 %v1508, 2147483648
        %v1518 = vmul.f32 %v1517, 1.442695
        %v1519 = vpow.pop %v1518
        %v1520 = vadd.f32 %v1519, 1.0
        %v1521 = vrcp.pop %v1520
        %v1522 = vmul.f32 1.0, %v1521
        %v1523 = vtanh.pop %v1509
        %v1524 = vxor.u32 %v1510, 2147483648
        %v1525 = vmul.f32 %v1524, 1.442695
        %v1526 = vpow.pop %v1525
        %v1527 = vadd.f32 %v1526, 1.0
        %v1528 = vrcp.pop %v1527
        %v1529 = vmul.f32 1.0, %v1528
        %v1531 = vrot.slane %v1413, 6
        %v1533 = vmul.f32 %v1522, %v1531
        %v1534 = vmul.f32 %v1516, %v1523
        %v1535 = vadd.f32 %v1533, %v1534
        %v1536 = vtanh.pop %v1535
        %v1537 = vmul.f32 %v1529, %v1536
        %1538 = vst [vmem:[#allocation2 + $0x8] sm:$0x3] %v1537
        %v1539 = vld [vmem:[#allocation3 + $0x20] sm:$0xc]
        %v1540 = vld [vmem:[#allocation3 + $0x28] sm:$0xc]
        %v1541 = vld [vmem:[#allocation3 + $0x30] sm:$0xc]
        %v1542 = vld [vmem:[#allocation3 + $0x38] sm:$0xc]
        %v1543 = vpack.c.bf16 %v1537, %v1537
        %1544 = vmatprep.subr.bf16.mxu0 %v844
        %1545 = vmatpush1.bf16.msra.mxu0 %v843
        %1546 = vmatprep.subr.bf16.mxu0 %v848
        %1547 = vmatpush1.bf16.msra.mxu0 %v847
        %1548 = vmatprep.subr.bf16.mxu0 %v852
        %1549 = vmatpush1.bf16.msra.mxu0 %v851
        %1550 = vmatprep.subr.bf16.mxu0 %v856
        %1551 = vmatpush1.bf16.msra.mxu0 %v855
        %1552 = vmatprep.subr.bf16.mxu0 %v860
        %1553 = vmatpush1.bf16.msra.mxu0 %v859
        %1554 = vmatprep.subr.bf16.mxu0 %v864
        %1555 = vmatpush1.bf16.msra.mxu0 %v863
        %1556 = vmatprep.subr.bf16.mxu0 %v868
        %1557 = vmatpush1.bf16.msra.mxu0 %v867
        %1558 = vmatprep.subr.bf16.mxu0 %v872
        %1559 = vmatpush1.bf16.msra.mxu0 %v871
        %1560 = vmatprep.subr.bf16.mxu0 0
        %1561 = vmatpush1.bf16.msra.mxu0 0
        %1562 = vmatprep.subr.bf16.mxu0 0
        %1563 = vmatpush1.bf16.msra.mxu0 0
        %1564 = vmatprep.subr.bf16.mxu0 0
        %1565 = vmatpush1.bf16.msra.mxu0 0
        %1566 = vmatprep.subr.bf16.mxu0 0
        %1567 = vmatpush1.bf16.msra.mxu0 0
        %1568 = vmatprep.subr.bf16.mxu0 0
        %1569 = vmatpush1.bf16.msra.mxu0 0
        %1570 = vmatprep.subr.bf16.mxu0 0
        %1571 = vmatpush1.bf16.msra.mxu0 0
        %1572 = vmatprep.subr.bf16.mxu0 0
        %1573 = vmatpush1.bf16.msra.mxu0 0
        %1574 = vmatprep.subr.bf16.mxu0 0
        %1575 = vmatpush1.bf16.msra.mxu0 0
        %1576 = vmatprep.mubr.bf16.mxu0 0
        %1577 = vmatmul.mubr.bf16.gmra.mrb[0].mxu0 %v1543
        %v1578 = vpop.f32.mrb[0].mxu0
        %v1579 = vadd.f32 0.0, %v1578
        %v1580 = vpop.f32.mrb[0].mxu0
        %v1581 = vadd.f32 0.0, %v1580
        %v1582 = vpop.f32.mrb[0].mxu0
        %v1583 = vpop.f32.mrb[0].mxu0
        %1584 = vdwg.mxu0
        %1585 = vmatprep.subr.bf16.mxu0 %v846
        %1586 = vmatpush1.bf16.msra.mxu0 %v845
        %1587 = vmatprep.subr.bf16.mxu0 %v850
        %1588 = vmatpush1.bf16.msra.mxu0 %v849
        %1589 = vmatprep.subr.bf16.mxu0 %v854
        %1590 = vmatpush1.bf16.msra.mxu0 %v853
        %1591 = vmatprep.subr.bf16.mxu0 %v858
        %1592 = vmatpush1.bf16.msra.mxu0 %v857
        %1593 = vmatprep.subr.bf16.mxu0 %v862
        %1594 = vmatpush1.bf16.msra.mxu0 %v861
        %1595 = vmatprep.subr.bf16.mxu0 %v866
        %1596 = vmatpush1.bf16.msra.mxu0 %v865
        %1597 = vmatprep.subr.bf16.mxu0 %v870
        %1598 = vmatpush1.bf16.msra.mxu0 %v869
        %1599 = vmatprep.subr.bf16.mxu0 %v874
        %1600 = vmatpush1.bf16.msra.mxu0 %v873
        %1601 = vmatprep.subr.bf16.mxu0 0
        %1602 = vmatpush1.bf16.msra.mxu0 0
        %1603 = vmatprep.subr.bf16.mxu0 0
        %1604 = vmatpush1.bf16.msra.mxu0 0
        %1605 = vmatprep.subr.bf16.mxu0 0
        %1606 = vmatpush1.bf16.msra.mxu0 0
        %1607 = vmatprep.subr.bf16.mxu0 0
        %1608 = vmatpush1.bf16.msra.mxu0 0
        %1609 = vmatprep.subr.bf16.mxu0 0
        %1610 = vmatpush1.bf16.msra.mxu0 0
        %1611 = vmatprep.subr.bf16.mxu0 0
        %1612 = vmatpush1.bf16.msra.mxu0 0
        %1613 = vmatprep.subr.bf16.mxu0 0
        %1614 = vmatpush1.bf16.msra.mxu0 0
        %1615 = vmatprep.subr.bf16.mxu0 0
        %1616 = vmatpush1.bf16.msra.mxu0 0
        %1617 = vmatprep.mubr.bf16.mxu0 0
        %1618 = vmatmul.mubr.bf16.gmra.mrb[0].mxu0 %v1543
        %v1619 = vpop.f32.mrb[0].mxu0
        %v1620 = vadd.f32 0.0, %v1619
        %v1621 = vpop.f32.mrb[0].mxu0
        %v1622 = vadd.f32 0.0, %v1621
        %v1623 = vpop.f32.mrb[0].mxu0
        %v1624 = vpop.f32.mrb[0].mxu0
        %1625 = vdwg.mxu0
        %v1630 = vrot.slane %v1579, 6
        %v1631 = vrot.slane %v1581, 6
        %v1632 = vrot.slane %v1620, 6
        %v1633 = vrot.slane %v1622, 6
        %v1638 = vadd.f32 %v1539, %v1630
        %v1639 = vadd.f32 %v1540, %v1631
        %v1640 = vadd.f32 %v1541, %v1632
        %v1641 = vadd.f32 %v1542, %v1633
        %v1642 = vxor.u32 %v1638, 2147483648
        %v1643 = vmul.f32 %v1642, 1.442695
        %v1644 = vpow.pop %v1643
        %v1645 = vadd.f32 %v1644, 1.0
        %v1646 = vrcp.pop %v1645
        %v1647 = vmul.f32 1.0, %v1646
        %v1648 = vxor.u32 %v1639, 2147483648
        %v1649 = vmul.f32 %v1648, 1.442695
        %v1650 = vpow.pop %v1649
        %v1651 = vadd.f32 %v1650, 1.0
        %v1652 = vrcp.pop %v1651
        %v1653 = vmul.f32 1.0, %v1652
        %v1654 = vtanh.pop %v1640
        %v1655 = vxor.u32 %v1641, 2147483648
        %v1656 = vmul.f32 %v1655, 1.442695
        %v1657 = vpow.pop %v1656
        %v1658 = vadd.f32 %v1657, 1.0
        %v1659 = vrcp.pop %v1658
        %v1660 = vmul.f32 1.0, %v1659
        %v1662 = vrot.slane %v1535, 6
        %v1664 = vmul.f32 %v1653, %v1662
        %v1665 = vmul.f32 %v1647, %v1654
        %v1666 = vadd.f32 %v1664, %v1665
        %v1667 = vtanh.pop %v1666
        %v1668 = vmul.f32 %v1660, %v1667
        %1669 = vst [vmem:[#allocation2 + $0x8] sm:$0xc] %v1668
        %v1670 = vld [vmem:[#allocation3 + $0x20] sm:$0x30]
        %v1671 = vld [vmem:[#allocation3 + $0x28] sm:$0x30]
        %v1672 = vld [vmem:[#allocation3 + $0x30] sm:$0x30]
        %v1673 = vld [vmem:[#allocation3 + $0x38] sm:$0x30]
        %v1674 = vpack.c.bf16 %v1668, %v1668
        %v1676 = vrot.slane %v1674, 1
        %1678 = vmatprep.subr.bf16.mxu0 %v844
        %1679 = vmatpush1.bf16.msra.mxu0 %v843
        %1680 = vmatprep.subr.bf16.mxu0 %v848
        %1681 = vmatpush1.bf16.msra.mxu0 %v847
        %1682 = vmatprep.subr.bf16.mxu0 %v852
        %1683 = vmatpush1.bf16.msra.mxu0 %v851
        %1684 = vmatprep.subr.bf16.mxu0 %v856
        %1685 = vmatpush1.bf16.msra.mxu0 %v855
        %1686 = vmatprep.subr.bf16.mxu0 %v860
        %1687 = vmatpush1.bf16.msra.mxu0 %v859
        %1688 = vmatprep.subr.bf16.mxu0 %v864
        %1689 = vmatpush1.bf16.msra.mxu0 %v863
        %1690 = vmatprep.subr.bf16.mxu0 %v868
        %1691 = vmatpush1.bf16.msra.mxu0 %v867
        %1692 = vmatprep.subr.bf16.mxu0 %v872
        %1693 = vmatpush1.bf16.msra.mxu0 %v871
        %1694 = vmatprep.subr.bf16.mxu0 0
        %1695 = vmatpush1.bf16.msra.mxu0 0
        %1696 = vmatprep.subr.bf16.mxu0 0
        %1697 = vmatpush1.bf16.msra.mxu0 0
        %1698 = vmatprep.subr.bf16.mxu0 0
        %1699 = vmatpush1.bf16.msra.mxu0 0
        %1700 = vmatprep.subr.bf16.mxu0 0
        %1701 = vmatpush1.bf16.msra.mxu0 0
        %1702 = vmatprep.subr.bf16.mxu0 0
        %1703 = vmatpush1.bf16.msra.mxu0 0
        %1704 = vmatprep.subr.bf16.mxu0 0
        %1705 = vmatpush1.bf16.msra.mxu0 0
        %1706 = vmatprep.subr.bf16.mxu0 0
        %1707 = vmatpush1.bf16.msra.mxu0 0
        %1708 = vmatprep.subr.bf16.mxu0 0
        %1709 = vmatpush1.bf16.msra.mxu0 0
        %1710 = vmatprep.mubr.bf16.mxu0 0
        %1711 = vmatmul.mubr.bf16.gmra.mrb[0].mxu0 %v1676
        %v1712 = vpop.f32.mrb[0].mxu0
        %v1713 = vadd.f32 0.0, %v1712
        %v1714 = vpop.f32.mrb[0].mxu0
        %v1715 = vadd.f32 0.0, %v1714
        %v1716 = vpop.f32.mrb[0].mxu0
        %v1717 = vpop.f32.mrb[0].mxu0
        %1718 = vdwg.mxu0
        %1719 = vmatprep.subr.bf16.mxu0 %v846
        %1720 = vmatpush1.bf16.msra.mxu0 %v845
        %1721 = vmatprep.subr.bf16.mxu0 %v850
        %1722 = vmatpush1.bf16.msra.mxu0 %v849
        %1723 = vmatprep.subr.bf16.mxu0 %v854
        %1724 = vmatpush1.bf16.msra.mxu0 %v853
        %1725 = vmatprep.subr.bf16.mxu0 %v858
        %1726 = vmatpush1.bf16.msra.mxu0 %v857
        %1727 = vmatprep.subr.bf16.mxu0 %v862
        %1728 = vmatpush1.bf16.msra.mxu0 %v861
        %1729 = vmatprep.subr.bf16.mxu0 %v866
        %1730 = vmatpush1.bf16.msra.mxu0 %v865
        %1731 = vmatprep.subr.bf16.mxu0 %v870
        %1732 = vmatpush1.bf16.msra.mxu0 %v869
        %1733 = vmatprep.subr.bf16.mxu0 %v874
        %1734 = vmatpush1.bf16.msra.mxu0 %v873
        %1735 = vmatprep.subr.bf16.mxu0 0
        %1736 = vmatpush1.bf16.msra.mxu0 0
        %1737 = vmatprep.subr.bf16.mxu0 0
        %1738 = vmatpush1.bf16.msra.mxu0 0
        %1739 = vmatprep.subr.bf16.mxu0 0
        %1740 = vmatpush1.bf16.msra.mxu0 0
        %1741 = vmatprep.subr.bf16.mxu0 0
        %1742 = vmatpush1.bf16.msra.mxu0 0
        %1743 = vmatprep.subr.bf16.mxu0 0
        %1744 = vmatpush1.bf16.msra.mxu0 0
        %1745 = vmatprep.subr.bf16.mxu0 0
        %1746 = vmatpush1.bf16.msra.mxu0 0
        %1747 = vmatprep.subr.bf16.mxu0 0
        %1748 = vmatpush1.bf16.msra.mxu0 0
        %1749 = vmatprep.subr.bf16.mxu0 0
        %1750 = vmatpush1.bf16.msra.mxu0 0
        %1751 = vmatprep.mubr.bf16.mxu0 0
        %1752 = vmatmul.mubr.bf16.gmra.mrb[0].mxu0 %v1676
        %v1753 = vpop.f32.mrb[0].mxu0
        %v1754 = vadd.f32 0.0, %v1753
        %v1755 = vpop.f32.mrb[0].mxu0
        %v1756 = vadd.f32 0.0, %v1755
        %v1757 = vpop.f32.mrb[0].mxu0
        %v1758 = vpop.f32.mrb[0].mxu0
        %1759 = vdwg.mxu0
        %v1764 = vrot.slane %v1713, 4
        %v1765 = vrot.slane %v1715, 4
        %v1766 = vrot.slane %v1754, 4
        %v1767 = vrot.slane %v1756, 4
        %v1772 = vadd.f32 %v1670, %v1764
        %v1773 = vadd.f32 %v1671, %v1765
        %v1774 = vadd.f32 %v1672, %v1766
        %v1775 = vadd.f32 %v1673, %v1767
        %v1776 = vxor.u32 %v1772, 2147483648
        %v1777 = vmul.f32 %v1776, 1.442695
        %v1778 = vpow.pop %v1777
        %v1779 = vadd.f32 %v1778, 1.0
        %v1780 = vrcp.pop %v1779
        %v1781 = vmul.f32 1.0, %v1780
        %v1782 = vxor.u32 %v1773, 2147483648
        %v1783 = vmul.f32 %v1782, 1.442695
        %v1784 = vpow.pop %v1783
        %v1785 = vadd.f32 %v1784, 1.0
        %v1786 = vrcp.pop %v1785
        %v1787 = vmul.f32 1.0, %v1786
        %v1788 = vtanh.pop %v1774
        %v1789 = vxor.u32 %v1775, 2147483648
        %v1790 = vmul.f32 %v1789, 1.442695
        %v1791 = vpow.pop %v1790
        %v1792 = vadd.f32 %v1791, 1.0
        %v1793 = vrcp.pop %v1792
        %v1794 = vmul.f32 1.0, %v1793
        %v1796 = vrot.slane %v1666, 6
        %v1798 = vmul.f32 %v1787, %v1796
        %v1799 = vmul.f32 %v1781, %v1788
        %v1800 = vadd.f32 %v1798, %v1799
        %v1801 = vtanh.pop %v1800
        %v1802 = vmul.f32 %v1794, %v1801
        %1803 = vst [vmem:[#allocation2 + $0x8] sm:$0x30] %v1802
        %v1804 = vld [vmem:[#allocation3 + $0x20] sm:$0xc0]
        %v1805 = vld [vmem:[#allocation3 + $0x28] sm:$0xc0]
        %v1806 = vld [vmem:[#allocation3 + $0x30] sm:$0xc0]
        %v1807 = vld [vmem:[#allocation3 + $0x38] sm:$0xc0]
        %v1808 = vpack.c.bf16 %v1802, %v1802
        %v1810 = vrot.slane %v1808, 2
        %1812 = vmatprep.subr.bf16.mxu0 %v844
        %1813 = vmatpush1.bf16.msra.mxu0 %v843
        %1814 = vmatprep.subr.bf16.mxu0 %v848
        %1815 = vmatpush1.bf16.msra.mxu0 %v847
        %1816 = vmatprep.subr.bf16.mxu0 %v852
        %1817 = vmatpush1.bf16.msra.mxu0 %v851
        %1818 = vmatprep.subr.bf16.mxu0 %v856
        %1819 = vmatpush1.bf16.msra.mxu0 %v855
        %1820 = vmatprep.subr.bf16.mxu0 %v860
        %1821 = vmatpush1.bf16.msra.mxu0 %v859
        %1822 = vmatprep.subr.bf16.mxu0 %v864
        %1823 = vmatpush1.bf16.msra.mxu0 %v863
        %1824 = vmatprep.subr.bf16.mxu0 %v868
        %1825 = vmatpush1.bf16.msra.mxu0 %v867
        %1826 = vmatprep.subr.bf16.mxu0 %v872
        %1827 = vmatpush1.bf16.msra.mxu0 %v871
        %1828 = vmatprep.subr.bf16.mxu0 0
        %1829 = vmatpush1.bf16.msra.mxu0 0
        %1830 = vmatprep.subr.bf16.mxu0 0
        %1831 = vmatpush1.bf16.msra.mxu0 0
        %1832 = vmatprep.subr.bf16.mxu0 0
        %1833 = vmatpush1.bf16.msra.mxu0 0
        %1834 = vmatprep.subr.bf16.mxu0 0
        %1835 = vmatpush1.bf16.msra.mxu0 0
        %1836 = vmatprep.subr.bf16.mxu0 0
        %1837 = vmatpush1.bf16.msra.mxu0 0
        %1838 = vmatprep.subr.bf16.mxu0 0
        %1839 = vmatpush1.bf16.msra.mxu0 0
        %1840 = vmatprep.subr.bf16.mxu0 0
        %1841 = vmatpush1.bf16.msra.mxu0 0
        %1842 = vmatprep.subr.bf16.mxu0 0
        %1843 = vmatpush1.bf16.msra.mxu0 0
        %1844 = vmatprep.mubr.bf16.mxu0 0
        %1845 = vmatmul.mubr.bf16.gmra.mrb[0].mxu0 %v1810
        %v1846 = vpop.f32.mrb[0].mxu0
        %v1847 = vadd.f32 0.0, %v1846
        %v1848 = vpop.f32.mrb[0].mxu0
        %v1849 = vadd.f32 0.0, %v1848
        %v1850 = vpop.f32.mrb[0].mxu0
        %v1851 = vpop.f32.mrb[0].mxu0
        %1852 = vdwg.mxu0
        %1853 = vmatprep.subr.bf16.mxu0 %v846
        %1854 = vmatpush1.bf16.msra.mxu0 %v845
        %1855 = vmatprep.subr.bf16.mxu0 %v850
        %1856 = vmatpush1.bf16.msra.mxu0 %v849
        %1857 = vmatprep.subr.bf16.mxu0 %v854
        %1858 = vmatpush1.bf16.msra.mxu0 %v853
        %1859 = vmatprep.subr.bf16.mxu0 %v858
        %1860 = vmatpush1.bf16.msra.mxu0 %v857
        %1861 = vmatprep.subr.bf16.mxu0 %v862
        %1862 = vmatpush1.bf16.msra.mxu0 %v861
        %1863 = vmatprep.subr.bf16.mxu0 %v866
        %1864 = vmatpush1.bf16.msra.mxu0 %v865
        %1865 = vmatprep.subr.bf16.mxu0 %v870
        %1866 = vmatpush1.bf16.msra.mxu0 %v869
        %1867 = vmatprep.subr.bf16.mxu0 %v874
        %1868 = vmatpush1.bf16.msra.mxu0 %v873
        %1869 = vmatprep.subr.bf16.mxu0 0
        %1870 = vmatpush1.bf16.msra.mxu0 0
        %1871 = vmatprep.subr.bf16.mxu0 0
        %1872 = vmatpush1.bf16.msra.mxu0 0
        %1873 = vmatprep.subr.bf16.mxu0 0
        %1874 = vmatpush1.bf16.msra.mxu0 0
        %1875 = vmatprep.subr.bf16.mxu0 0
        %1876 = vmatpush1.bf16.msra.mxu0 0
        %1877 = vmatprep.subr.bf16.mxu0 0
        %1878 = vmatpush1.bf16.msra.mxu0 0
        %1879 = vmatprep.subr.bf16.mxu0 0
        %1880 = vmatpush1.bf16.msra.mxu0 0
        %1881 = vmatprep.subr.bf16.mxu0 0
        %1882 = vmatpush1.bf16.msra.mxu0 0
        %1883 = vmatprep.subr.bf16.mxu0 0
        %1884 = vmatpush1.bf16.msra.mxu0 0
        %1885 = vmatprep.mubr.bf16.mxu0 0
        %1886 = vmatmul.mubr.bf16.gmra.mrb[0].mxu0 %v1810
        %v1887 = vpop.f32.mrb[0].mxu0
        %v1888 = vadd.f32 0.0, %v1887
        %v1889 = vpop.f32.mrb[0].mxu0
        %v1890 = vadd.f32 0.0, %v1889
        %v1891 = vpop.f32.mrb[0].mxu0
        %v1892 = vpop.f32.mrb[0].mxu0
        %1893 = vdwg.mxu0
        %v1898 = vrot.slane %v1847, 2
        %v1899 = vrot.slane %v1849, 2
        %v1900 = vrot.slane %v1888, 2
        %v1901 = vrot.slane %v1890, 2
        %v1906 = vadd.f32 %v1804, %v1898
        %v1907 = vadd.f32 %v1805, %v1899
        %v1908 = vadd.f32 %v1806, %v1900
        %v1909 = vadd.f32 %v1807, %v1901
        %v1910 = vxor.u32 %v1906, 2147483648
        %v1911 = vmul.f32 %v1910, 1.442695
        %v1912 = vpow.pop %v1911
        %v1913 = vadd.f32 %v1912, 1.0
        %v1914 = vrcp.pop %v1913
        %v1915 = vmul.f32 1.0, %v1914
        %v1916 = vxor.u32 %v1907, 2147483648
        %v1917 = vmul.f32 %v1916, 1.442695
        %v1918 = vpow.pop %v1917
        %v1919 = vadd.f32 %v1918, 1.0
        %v1920 = vrcp.pop %v1919
        %v1921 = vmul.f32 1.0, %v1920
        %v1922 = vtanh.pop %v1908
        %v1923 = vxor.u32 %v1909, 2147483648
        %v1924 = vmul.f32 %v1923, 1.442695
        %v1925 = vpow.pop %v1924
        %v1926 = vadd.f32 %v1925, 1.0
        %v1927 = vrcp.pop %v1926
        %v1928 = vmul.f32 1.0, %v1927
        %v1930 = vrot.slane %v1800, 6
        %v1932 = vmul.f32 %v1921, %v1930
        %v1933 = vmul.f32 %v1915, %v1922
        %v1934 = vadd.f32 %v1932, %v1933
        %v1935 = vtanh.pop %v1934
        %v1936 = vmul.f32 %v1928, %v1935
        %1937 = vst [vmem:[#allocation2 + $0x8] sm:$0xc0] %v1936
        %p1938 = scmp.eq.s32.totalorder %s26, 9
        // Predicated region
        $region77: #{tpu_custom_call.1} parent=43 // pred_check
          %p1939 = pneg %p1938
        $region78: #{tpu_custom_call.1} parent=43 // pred_check_branch
          %1941 = sbr.rel (%p1939) target = $region80
        $region79: #{tpu_custom_call.1} parent=43 // pred_region
          %v1942 = vld [vmem:[#allocation12] sm:$0xff]
          %v1943 = vld [vmem:[#allocation12 + $0x8] sm:$0xff]
          %v1944 = vld [vmem:[#allocation12 + $0x10] sm:$0xff]
          %v1945 = vld [vmem:[#allocation12 + $0x18] sm:$0xff]
          %v1946 = vld [vmem:[#allocation12 + $0x20] sm:$0xff]
          %v1947 = vld [vmem:[#allocation12 + $0x28] sm:$0xff]
          %v1948 = vld [vmem:[#allocation12 + $0x30] sm:$0xff]
          %v1949 = vld [vmem:[#allocation12 + $0x38] sm:$0xff]
          %v1950 = vld [vmem:[#allocation12 + $0x40] sm:$0xff]
          %v1951 = vld [vmem:[#allocation12 + $0x48] sm:$0xff]
          %v1952 = vld [vmem:[#allocation12 + $0x50] sm:$0xff]
          %v1953 = vld [vmem:[#allocation12 + $0x58] sm:$0xff]
          %v1954 = vld [vmem:[#allocation12 + $0x60] sm:$0xff]
          %v1955 = vld [vmem:[#allocation12 + $0x68] sm:$0xff]
          %v1956 = vld [vmem:[#allocation12 + $0x70] sm:$0xff]
          %v1957 = vld [vmem:[#allocation12 + $0x78] sm:$0xff]
          %v1958 = vld [vmem:[#allocation13] sm:$0x1]
          %v1960 = vlaneseq
          %v1961 = vshrl.u32 %v1960, 7
          %v1962 = vsub.s32 0, %v1961
          %v1963 = vrot.slane %v1958, %v1962
          %v1966 = vrot.slane %v1936, 6
          %1968 = vmatprep.subr.mxu0 0.0
          %1969 = vmatpush1.msra.mxu0 %v1942
          %1970 = vmatprep.subr.mxu0 0.0
          %1971 = vmatpush1.msra.mxu0 %v1943
          %1972 = vmatprep.subr.mxu0 0.0
          %1973 = vmatpush1.msra.mxu0 %v1944
          %1974 = vmatprep.subr.mxu0 0.0
          %1975 = vmatpush1.msra.mxu0 %v1945
          %1976 = vmatprep.subr.mxu0 0.0
          %1977 = vmatpush1.msra.mxu0 %v1946
          %1978 = vmatprep.subr.mxu0 0.0
          %1979 = vmatpush1.msra.mxu0 %v1947
          %1980 = vmatprep.subr.mxu0 0.0
          %1981 = vmatpush1.msra.mxu0 %v1948
          %1982 = vmatprep.subr.mxu0 0.0
          %1983 = vmatpush1.msra.mxu0 %v1949
          %1984 = vmatprep.subr.mxu0 0.0
          %1985 = vmatpush1.msra.mxu0 %v1950
          %1986 = vmatprep.subr.mxu0 0.0
          %1987 = vmatpush1.msra.mxu0 %v1951
          %1988 = vmatprep.subr.mxu0 0.0
          %1989 = vmatpush1.msra.mxu0 %v1952
          %1990 = vmatprep.subr.mxu0 0.0
          %1991 = vmatpush1.msra.mxu0 %v1953
          %1992 = vmatprep.subr.mxu0 0.0
          %1993 = vmatpush1.msra.mxu0 %v1954
          %1994 = vmatprep.subr.mxu0 0.0
          %1995 = vmatpush1.msra.mxu0 %v1955
          %1996 = vmatprep.subr.mxu0 0.0
          %1997 = vmatpush1.msra.mxu0 %v1956
          %1998 = vmatprep.subr.mxu0 0.0
          %1999 = vmatpush1.msra.mxu0 %v1957
          %2000 = vmatprep.subr.mxu0 0.0
          %2001 = vmatpush1.msra.mxu0 0.0
          %2002 = vmatprep.subr.mxu0 0.0
          %2003 = vmatpush1.msra.mxu0 0.0
          %2004 = vmatprep.subr.mxu0 0.0
          %2005 = vmatpush1.msra.mxu0 0.0
          %2006 = vmatprep.subr.mxu0 0.0
          %2007 = vmatpush1.msra.mxu0 0.0
          %2008 = vmatprep.subr.mxu0 0.0
          %2009 = vmatpush1.msra.mxu0 0.0
          %2010 = vmatprep.subr.mxu0 0.0
          %2011 = vmatpush1.msra.mxu0 0.0
          %2012 = vmatprep.subr.mxu0 0.0
          %2013 = vmatpush1.msra.mxu0 0.0
          %2014 = vmatprep.subr.mxu0 0.0
          %2015 = vmatpush1.msra.mxu0 0.0
          %2016 = vmatprep.subr.mxu0 0.0
          %2017 = vmatpush1.msra.mxu0 0.0
          %2018 = vmatprep.subr.mxu0 0.0
          %2019 = vmatpush1.msra.mxu0 0.0
          %2020 = vmatprep.subr.mxu0 0.0
          %2021 = vmatpush1.msra.mxu0 0.0
          %2022 = vmatprep.subr.mxu0 0.0
          %2023 = vmatpush1.msra.mxu0 0.0
          %2024 = vmatprep.subr.mxu0 0.0
          %2025 = vmatpush1.msra.mxu0 0.0
          %2026 = vmatprep.subr.mxu0 0.0
          %2027 = vmatpush1.msra.mxu0 0.0
          %2028 = vmatprep.subr.mxu0 0.0
          %2029 = vmatpush1.msra.mxu0 0.0
          %2030 = vmatprep.subr.mxu0 0.0
          %2031 = vmatpush1.msra.mxu0 0.0
          %2032 = vmatprep.mubr.f32.mxu0 0.0
          %2033 = vmatmul.mubr.f32.gmra.mrb[0].mxu0 %v1966
          %v2034 = vpop.f32.mrb[0].mxu0
          %v2035 = vadd.f32 %v1963, %v2034
          %v2036 = vpop.f32.mrb[0].mxu0
          %2037 = vdwg.mxu0
          %2038 = vst [vmem:[#allocation15] sm:$0x3] %v2035
        $region80: #{tpu_custom_call.1} parent=43 // pred_fallthru
          _
        // Predicated region
        $region81: #{tpu_custom_call.1} parent=43 // pred_check
          %p2039 = pneg %p180
        $region82: #{tpu_custom_call.1} parent=43 // pred_check_branch
          %2041 = sbr.rel (%p2039) target = $region84
        $region83: #{tpu_custom_call.1} parent=43 // pred_region
          %s2043 = ssub.s32 32, 32
          %2044 = vsyncadd [#allocation6], %s2043
          %s2046 = sshll.u32 [#allocation15], 4
          %s2047 = int_to_ptr.vmem [resolvable:$true] %s2046
          %2049 = dma.vmem_to_hbm [thread:$0]  %s2047, 32, %s6, [#allocation6]
        $region84: #{tpu_custom_call.1} parent=43 // pred_fallthru
          _
        // Predicated region
        $region85: #{tpu_custom_call.1} parent=43 // pred_check
          %p2050 = pneg %p180
        $region86: #{tpu_custom_call.1} parent=43 // pred_check_branch
          %2052 = sbr.rel (%p2050) target = $region88
        $region87: #{tpu_custom_call.1} parent=43 // pred_region
          %2053 = dma.done [#allocation6], 32
        $region88: #{tpu_custom_call.1} parent=43 // pred_fallthru
          _
      $region44: #{tpu_custom_call.1} parent=5 // pred_fallthru
        _
      %p2054 = scmp.le.s32.totalorder 2, %s21
      // Predicated region
      $region89: #{tpu_custom_call.1} parent=5 // pred_check
        %p2055 = pneg %p2054
      $region90: #{tpu_custom_call.1} parent=5 // pred_check_branch
        %2057 = sbr.rel (%p2055) target = $region92
      $region91: #{tpu_custom_call.1} parent=5 // pred_region
        %s2058 = ssub.s32 %s21, 2
      $region92: #{tpu_custom_call.1} parent=5 // pred_fallthru
        _
    $region6: #{tpu_custom_call.1} parent=1 // loop_footer
      %s25 = sadd.s32 1, %s21
    $region7: #{tpu_custom_call.1} parent=1 // loop_footer_branch
      %20 = sbr.rel target = $region3
    $region8: #{tpu_custom_call.1} parent=1 // loop_exit
      _
    %2059 = vsyncpa [#allocation5], 1
    %s2060 = scalar_lea.sflag [#allocation5], 1
    %2061 = vsyncpa %s2060, 1
    %2062 = vsyncpa [#allocation8], 1
    %s2063 = scalar_lea.sflag [#allocation8], 1
    %2064 = vsyncpa %s2063, 1
    %2065 = vsyncpa [#allocation11], 1
    %s2066 = scalar_lea.sflag [#allocation11], 1
    %2067 = vsyncpa %s2066, 1
    %2068 = vsyncpa [#allocation14], 1
    %2069 = vsyncpa [#allocation6], 1
    %s2070 = scalar_lea.sflag [#allocation6], 1
    %2071 = vsyncpa %s2070, 1

</llo_original>
